<compile_context>
chip_gen: v5e
topology: v5e:2x2
jax: 0.10.0
libtpu: 0.0.40
codegen_flags: <defaults>
</compile_context>

<pallas_src>
import functools
import math

import jax
import jax.numpy as jnp
from jax.experimental import pallas as pl
from jax.experimental.pallas import tpu as pltpu

BN_EPS = 1e-5
OUT_SUB = 8  # 3 real output channels zero-padded to 8 sublanes


def _round_up(x, m):
    return ((x + m - 1) // m) * m


def _cdiv(a, b):
    return -(-a // b)


def _vmem_budget_bytes():
    """~3/4 of the physical per-core VMEM (48 MiB on v7x, 96 MiB on v5e/v6e)."""
    try:
        cap = int(pltpu.get_tpu_info().vmem_capacity_bytes)
    except Exception:
        cap = 64 * 1024 * 1024  # assume the smallest (v7x per-TC) if unknown
    return (cap * 3) // 4


def _vmem_tile_bytes(shape, dtype):
    """Padded VMEM footprint of one buffer of `shape` ((8|16) sublanes x 128 lanes)."""
    itemsize = jnp.dtype(dtype).itemsize
    sub = 8 * (4 // itemsize)  # 8 for f32, 16 for bf16
    if len(shape) == 1:
        r, c = 1, shape[0]
        lead = 1
    else:
        r, c = shape[-2], shape[-1]
        lead = math.prod(shape[:-2]) if len(shape) > 2 else 1
    return lead * _round_up(r, sub) * _round_up(c, 128) * itemsize


def _pick_tn(c0, n, b, budget, param_vmem, single_buffer):
    """Point-tile width: biggest lane-aligned tile that fits the VMEM budget."""
    param_cost = param_vmem * (1 if single_buffer else 2)
    avail = budget - param_cost - (4 << 20)  # headroom for Mosaic internal scratch
    per_pt = (c0 * 4 * 2                      # f32 x tile, double buffered
              + c0 * 2                        # bf16 cast of the x tile
              + c0 * 4                        # largest f32 intermediate
              + (c0 + c0 // 2 + c0 // 4) * 2  # bf16 layer outputs
              + OUT_SUB * 4 * 2)              # padded f32 out tile, double buffered
    tn = max(int(avail) // per_pt, 128)
    tn = min(tn, 2048)
    if tn >= n:
        tn = n                                # single full-extent block (always legal)
    else:
        tn = max((tn // 128) * 128, 128)      # lane-aligned; ragged last block is OK
    # Keep >=2 grid steps so v7x's two TensorCores both get work when possible.
    if b * _cdiv(n, tn) < 2 and n > 128:
        tn = max(128, _round_up(_cdiv(n, 2), 128))
    return int(tn)


def pointgencon_kernel(x_ref,
                       w1_ref, t1_ref,
                       w2_ref, t2_ref,
                       w3_ref, t3_ref,
                       w4_ref, b4_ref,
                       out_ref):
    """Fused 4-layer per-point MLP on one (C0, tn) channels-first point tile."""
    h = x_ref[...].astype(jnp.bfloat16)                       # (C0, tn) bf16

    def block(h, w_ref, t_ref):
        # Conv1d(k=1) in channels-first layout: (dout, din) @ (din, tn).
        # Eval-mode BN scale is pre-folded into the weight rows; only the
        # per-channel shift remains.  bf16 operands, f32 MXU accumulation.
        z = jnp.dot(w_ref[...], h, preferred_element_type=jnp.float32)
        z = jnp.maximum(z + t_ref[...], 0.0)                   # shift + ReLU (f32)
        return z.astype(jnp.bfloat16)                          # operand for next dot

    h = block(h, w1_ref, t1_ref)
    h = block(h, w2_ref, t2_ref)
    h = block(h, w3_ref, t3_ref)

    z = jnp.dot(w4_ref[...], h, preferred_element_type=jnp.float32) + b4_ref[...]
    out_ref[...] = jnp.tanh(z).astype(out_ref.dtype)           # (8, tn); rows 3.. pad


def init_params(key, bottleneck_size=256):
    """PyTorch-style raw parameters for PointGenCon.

    Conv1d(k=1): weight (out, in), bias (out,), both ~ U(-1/sqrt(in), 1/sqrt(in)).
    BatchNorm1d gamma/beta/running_mean/running_var are randomized (instead of
    the default 1/0/0/1) so the eval-mode BN fold is actually exercised.
    """
    c0 = bottleneck_size
    dims = [c0, c0, c0 // 2, c0 // 4, 3]
    keys = list(jax.random.split(key, 4 * 2 + 3 * 4))
    p = {}
    for li in range(4):
        din, dout = dims[li], dims[li + 1]
        bound = float(din) ** -0.5
        p[f"conv{li + 1}_w"] = jax.random.uniform(
            keys.pop(0), (dout, din), jnp.float32, -bound, bound)
        p[f"conv{li + 1}_b"] = jax.random.uniform(
            keys.pop(0), (dout,), jnp.float32, -bound, bound)
    for li in range(3):
        dout = dims[li + 1]
        p[f"bn{li + 1}_gamma"] = jax.random.uniform(
            keys.pop(0), (dout,), jnp.float32, 0.8, 1.2)
        p[f"bn{li + 1}_beta"] = 0.05 * jax.random.normal(
            keys.pop(0), (dout,), jnp.float32)
        p[f"bn{li + 1}_mean"] = 0.05 * jax.random.normal(
            keys.pop(0), (dout,), jnp.float32)
        p[f"bn{li + 1}_var"] = jax.random.uniform(
            keys.pop(0), (dout,), jnp.float32, 0.8, 1.2)
    return p


def fold_params(p):
    """Fold conv bias + eval-mode BN into (W' bf16, shift f32) per layer.

    BN scale is folded into the weight rows (W' = scale * W).  The 3-wide
    final layer is zero-padded to OUT_SUB output sublanes so the kernel's
    output store is a clean (8, tn) block.
    """
    folded = []
    for li in range(3):
        w = p[f"conv{li + 1}_w"]                     # (out, in)
        b = p[f"conv{li + 1}_b"]
        g = p[f"bn{li + 1}_gamma"]
        be = p[f"bn{li + 1}_beta"]
        mu = p[f"bn{li + 1}_mean"]
        var = p[f"bn{li + 1}_var"]
        scale = g * jax.lax.rsqrt(var + BN_EPS)      # (out,)
        shift = (b - mu) * scale + be                # (out,)
        w_eff = w * scale[:, None]                   # BN scale folded into weights
        folded += [w_eff.astype(jnp.bfloat16),               # (out, in) bf16
                   shift.reshape(-1, 1).astype(jnp.float32)]  # (out, 1) f32
    w4 = p["conv4_w"]                                # (3, in)
    b4 = p["conv4_b"]                                # (3,)
    din = w4.shape[1]
    w4p = jnp.zeros((OUT_SUB, din), jnp.float32).at[:3, :].set(w4)
    b4p = jnp.zeros((OUT_SUB, 1), jnp.float32).at[:3, 0].set(b4)
    folded += [w4p.astype(jnp.bfloat16), b4p]
    return folded


@functools.partial(jax.jit, static_argnames=("tn", "vmem_limit", "single_buffer"))
def _pointgencon_call(x, folded_params, *, tn, vmem_limit, single_buffer):
    B, C0, N = x.shape
    n_blocks = _cdiv(N, tn)
    grid = (B, n_blocks)

    # x stays in its native (B, C0, N) layout: channels on sublanes, points on
    # lanes; the ragged last point tile (if N % tn != 0) is masked by Pallas.
    in_specs = [pl.BlockSpec((None, C0, tn), lambda b, j: (b, 0, j))]

    # Weights / shifts: full arrays with constant index_map -> VMEM-resident.
    # Single-buffer them (no useless double-buffering) when they are big enough
    # for the second buffer to matter (e.g. bottleneck=2500 on v7x's 64 MiB VMEM).
    param_kwargs = {"pipeline_mode": pl.Buffered(1)} if single_buffer else {}
    for prm in folded_params:
        in_specs.append(pl.BlockSpec(prm.shape, lambda b, j: (0, 0), **param_kwargs))

    out = pl.pallas_call(
        pointgencon_kernel,
        out_shape=jax.ShapeDtypeStruct((B, OUT_SUB, N), jnp.float32),
        grid_spec=pltpu.PrefetchScalarGridSpec(
            num_scalar_prefetch=0,
            grid=grid,
            in_specs=in_specs,
            out_specs=pl.BlockSpec((None, OUT_SUB, tn), lambda b, j: (b, 0, j)),
        ),
        compiler_params=pltpu.CompilerParams(
            dimension_semantics=("parallel", "parallel"),
            vmem_limit_bytes=int(vmem_limit),
        ),
    )(x, *folded_params)

    return out[:, :3, :]                             # drop the 5 zero-pad channels


def pointgencon_pallas(x, folded_params):
    """x: (B, C0, N) float32 -> (B, 3, N) float32 (PyTorch layout)."""
    B, C0, N = x.shape
    budget = _vmem_budget_bytes()
    param_vmem = sum(_vmem_tile_bytes(p.shape, p.dtype) for p in folded_params)
    # Single-buffer the resident params only when double-buffering them would
    # consume a meaningful chunk (>25%) of the per-core VMEM budget.
    single_buffer = 2 * param_vmem > budget // 4
    tn = _pick_tn(C0, N, B, budget, param_vmem, single_buffer)
    return _pointgencon_call(x, tuple(folded_params),
                             tn=tn, vmem_limit=budget, single_buffer=single_buffer)


def pointgencon_reference(x, p):
    """Pure-JAX f32 reference of the PyTorch forward (eval-mode BatchNorm)."""
    B, C0, N = x.shape
    h = jnp.transpose(x, (0, 2, 1)).reshape(B * N, C0)
    for li in range(3):
        z = h @ jnp.transpose(p[f"conv{li + 1}_w"]) + p[f"conv{li + 1}_b"]
        z = (z - p[f"bn{li + 1}_mean"]) * jax.lax.rsqrt(
            p[f"bn{li + 1}_var"] + BN_EPS)
        z = z * p[f"bn{li + 1}_gamma"] + p[f"bn{li + 1}_beta"]
        h = jnp.maximum(z, 0.0)
    z = jnp.tanh(h @ jnp.transpose(p["conv4_w"]) + p["conv4_b"])
    return jnp.transpose(z.reshape(B, N, 3), (0, 2, 1))


if __name__ == "__main__":
    key = jax.random.PRNGKey(0)
    pkey, xkey = jax.random.split(key)

    bottleneck = 256          # small stand-in for the default 2500
    B, N = 2, 512             # grid = (2 batches, 1 point tile) -> 2 parallel steps

    params = init_params(pkey, bottleneck)
    folded = fold_params(params)

    x = jax.random.normal(xkey, (B, bottleneck, N), dtype=jnp.float32)

    out = pointgencon_pallas(x, folded)
    out = jax.block_until_ready(out)

    ref = pointgencon_reference(x, params)
    assert out.shape == (B, 3, N), out.shape
    max_err = float(jnp.max(jnp.abs(out - ref)))
    # bf16 matmul operands (BN scale folded into bf16 weights, f32 accumulation)
    # -> loosened tolerance vs the f32 reference.
    assert max_err < 4e-2, max_err

    print("KERNEL_OK")
</pallas_src>

<mosaic_0001>
module attributes {stable_mosaic.version = 11 : i64} {
  func.func @pointgencon_kernel(%arg0: i32, %arg1: i32, %arg2: memref<1x256x512xf32, #tpu.memory_space<vmem>>, %arg3: memref<256x256xbf16, #tpu.memory_space<vmem>>, %arg4: memref<256x1xf32, #tpu.memory_space<vmem>>, %arg5: memref<128x256xbf16, #tpu.memory_space<vmem>>, %arg6: memref<128x1xf32, #tpu.memory_space<vmem>>, %arg7: memref<64x128xbf16, #tpu.memory_space<vmem>>, %arg8: memref<64x1xf32, #tpu.memory_space<vmem>>, %arg9: memref<8x64xbf16, #tpu.memory_space<vmem>>, %arg10: memref<8x1xf32, #tpu.memory_space<vmem>>, %arg11: memref<1x8x512xf32, #tpu.memory_space<vmem>>) attributes {dimension_semantics = [#tpu.dimension_semantics<parallel>, #tpu.dimension_semantics<parallel>], iteration_bounds = array<i64: 2, 1>, scalar_prefetch = 0 : i64, scratch_operands = 0 : i64, tpu.core_type = #tpu.core_type<tc>, window_params = [{transform_indices = @transform_0, window_bounds = array<i64: 1, 256, 512>}, {pipeline_mode = #tpu.pipeline_mode<synchronous>, transform_indices = @transform_1, window_bounds = array<i64: 256, 256>}, {pipeline_mode = #tpu.pipeline_mode<synchronous>, transform_indices = @transform_2, window_bounds = array<i64: 256, 1>}, {pipeline_mode = #tpu.pipeline_mode<synchronous>, transform_indices = @transform_3, window_bounds = array<i64: 128, 256>}, {pipeline_mode = #tpu.pipeline_mode<synchronous>, transform_indices = @transform_4, window_bounds = array<i64: 128, 1>}, {pipeline_mode = #tpu.pipeline_mode<synchronous>, transform_indices = @transform_5, window_bounds = array<i64: 64, 128>}, {pipeline_mode = #tpu.pipeline_mode<synchronous>, transform_indices = @transform_6, window_bounds = array<i64: 64, 1>}, {pipeline_mode = #tpu.pipeline_mode<synchronous>, transform_indices = @transform_7, window_bounds = array<i64: 8, 64>}, {pipeline_mode = #tpu.pipeline_mode<synchronous>, transform_indices = @transform_8, window_bounds = array<i64: 8, 1>}, {transform_indices = @transform_9, window_bounds = array<i64: 1, 8, 512>}]} {
    %c0 = arith.constant 0 : index
    %c0_0 = arith.constant 0 : index
    %c0_1 = arith.constant 0 : index
    %0 = vector.load %arg2[%c0, %c0_0, %c0_1] : memref<1x256x512xf32, #tpu.memory_space<vmem>>, vector<1x256x512xf32>
    %1 = vector.shape_cast %0 : vector<1x256x512xf32> to vector<256x512xf32>
    %2 = arith.truncf %1 : vector<256x512xf32> to vector<256x512xbf16>
    %c0_2 = arith.constant 0 : index
    %c0_3 = arith.constant 0 : index
    %3 = vector.load %arg3[%c0_2, %c0_3] : memref<256x256xbf16, #tpu.memory_space<vmem>>, vector<256x256xbf16>
    %cst = arith.constant dense<0.000000e+00> : vector<256x512xf32>
    %4 = tpu.matmul %3, %2, %cst {dimension_numbers = #tpu.dot_dimension_numbers<[1], [0], [0], [1], [0, 0, 1, 1], [], []>} : vector<256x256xbf16>, vector<256x512xbf16>, vector<256x512xf32> -> vector<256x512xf32>
    %c0_4 = arith.constant 0 : index
    %c0_5 = arith.constant 0 : index
    %5 = vector.load %arg4[%c0_4, %c0_5] : memref<256x1xf32, #tpu.memory_space<vmem>>, vector<256x1xf32>
    %6 = vector.broadcast %5 : vector<256x1xf32> to vector<256x512xf32>
    %7 = arith.addf %4, %6 : vector<256x512xf32>
    %cst_6 = arith.constant 0.000000e+00 : f32
    %8 = vector.broadcast %cst_6 : f32 to vector<256x512xf32>
    %9 = arith.maximumf %7, %8 : vector<256x512xf32>
    %10 = arith.truncf %9 : vector<256x512xf32> to vector<256x512xbf16>
    %c0_7 = arith.constant 0 : index
    %c0_8 = arith.constant 0 : index
    %11 = vector.load %arg5[%c0_7, %c0_8] : memref<128x256xbf16, #tpu.memory_space<vmem>>, vector<128x256xbf16>
    %cst_9 = arith.constant dense<0.000000e+00> : vector<128x512xf32>
    %12 = tpu.matmul %11, %10, %cst_9 {dimension_numbers = #tpu.dot_dimension_numbers<[1], [0], [0], [1], [0, 0, 1, 1], [], []>} : vector<128x256xbf16>, vector<256x512xbf16>, vector<128x512xf32> -> vector<128x512xf32>
    %c0_10 = arith.constant 0 : index
    %c0_11 = arith.constant 0 : index
    %13 = vector.load %arg6[%c0_10, %c0_11] : memref<128x1xf32, #tpu.memory_space<vmem>>, vector<128x1xf32>
    %14 = vector.broadcast %13 : vector<128x1xf32> to vector<128x512xf32>
    %15 = arith.addf %12, %14 : vector<128x512xf32>
    %cst_12 = arith.constant 0.000000e+00 : f32
    %16 = vector.broadcast %cst_12 : f32 to vector<128x512xf32>
    %17 = arith.maximumf %15, %16 : vector<128x512xf32>
    %18 = arith.truncf %17 : vector<128x512xf32> to vector<128x512xbf16>
    %c0_13 = arith.constant 0 : index
    %c0_14 = arith.constant 0 : index
    %19 = vector.load %arg7[%c0_13, %c0_14] : memref<64x128xbf16, #tpu.memory_space<vmem>>, vector<64x128xbf16>
    %cst_15 = arith.constant dense<0.000000e+00> : vector<64x512xf32>
    %20 = tpu.matmul %19, %18, %cst_15 {dimension_numbers = #tpu.dot_dimension_numbers<[1], [0], [0], [1], [0, 0, 1, 1], [], []>} : vector<64x128xbf16>, vector<128x512xbf16>, vector<64x512xf32> -> vector<64x512xf32>
    %c0_16 = arith.constant 0 : index
    %c0_17 = arith.constant 0 : index
    %21 = vector.load %arg8[%c0_16, %c0_17] : memref<64x1xf32, #tpu.memory_space<vmem>>, vector<64x1xf32>
    %22 = vector.broadcast %21 : vector<64x1xf32> to vector<64x512xf32>
    %23 = arith.addf %20, %22 : vector<64x512xf32>
    %cst_18 = arith.constant 0.000000e+00 : f32
    %24 = vector.broadcast %cst_18 : f32 to vector<64x512xf32>
    %25 = arith.maximumf %23, %24 : vector<64x512xf32>
    %26 = arith.truncf %25 : vector<64x512xf32> to vector<64x512xbf16>
    %c0_19 = arith.constant 0 : index
    %c0_20 = arith.constant 0 : index
    %27 = vector.load %arg9[%c0_19, %c0_20] : memref<8x64xbf16, #tpu.memory_space<vmem>>, vector<8x64xbf16>
    %cst_21 = arith.constant dense<0.000000e+00> : vector<8x512xf32>
    %28 = tpu.matmul %27, %26, %cst_21 {dimension_numbers = #tpu.dot_dimension_numbers<[1], [0], [0], [1], [0, 0, 1, 1], [], []>} : vector<8x64xbf16>, vector<64x512xbf16>, vector<8x512xf32> -> vector<8x512xf32>
    %c0_22 = arith.constant 0 : index
    %c0_23 = arith.constant 0 : index
    %29 = vector.load %arg10[%c0_22, %c0_23] : memref<8x1xf32, #tpu.memory_space<vmem>>, vector<8x1xf32>
    %30 = vector.broadcast %29 : vector<8x1xf32> to vector<8x512xf32>
    %31 = arith.addf %28, %30 : vector<8x512xf32>
    %32 = math.tanh %31 : vector<8x512xf32>
    %c0_24 = arith.constant 0 : index
    %c0_25 = arith.constant 0 : index
    %c0_26 = arith.constant 0 : index
    %33 = vector.load %arg11[%c0_24, %c0_25, %c0_26] : memref<1x8x512xf32, #tpu.memory_space<vmem>>, vector<1x8x512xf32>
    %34 = vector.shape_cast %33 : vector<1x8x512xf32> to vector<8x512xf32>
    %35 = vector.shape_cast %32 : vector<8x512xf32> to vector<1x8x512xf32>
    tpu.vector_store %arg11[%c0_24, %c0_25, %c0_26], %35 {strides = array<i32>} : memref<1x8x512xf32, #tpu.memory_space<vmem>>, vector<1x8x512xf32>,
    return
  }
  func.func @transform_0(%arg0: i32, %arg1: i32) -> (i32, i32, i32) {
    %c0_i32 = arith.constant 0 : i32
    %c0_i32_0 = arith.constant 0 : i32
    return %arg0, %c0_i32, %arg1 : i32, i32, i32
  }
  func.func @transform_1(%arg0: i32, %arg1: i32) -> (i32, i32) {
    %c0_i32 = arith.constant 0 : i32
    %c0_i32_0 = arith.constant 0 : i32
    %c0_i32_1 = arith.constant 0 : i32
    return %c0_i32, %c0_i32_0 : i32, i32
  }
  func.func @transform_2(%arg0: i32, %arg1: i32) -> (i32, i32) {
    %c0_i32 = arith.constant 0 : i32
    %c0_i32_0 = arith.constant 0 : i32
    %c0_i32_1 = arith.constant 0 : i32
    return %c0_i32, %c0_i32_0 : i32, i32
  }
  func.func @transform_3(%arg0: i32, %arg1: i32) -> (i32, i32) {
    %c0_i32 = arith.constant 0 : i32
    %c0_i32_0 = arith.constant 0 : i32
    %c0_i32_1 = arith.constant 0 : i32
    return %c0_i32, %c0_i32_0 : i32, i32
  }
  func.func @transform_4(%arg0: i32, %arg1: i32) -> (i32, i32) {
    %c0_i32 = arith.constant 0 : i32
    %c0_i32_0 = arith.constant 0 : i32
    %c0_i32_1 = arith.constant 0 : i32
    return %c0_i32, %c0_i32_0 : i32, i32
  }
  func.func @transform_5(%arg0: i32, %arg1: i32) -> (i32, i32) {
    %c0_i32 = arith.constant 0 : i32
    %c0_i32_0 = arith.constant 0 : i32
    %c0_i32_1 = arith.constant 0 : i32
    return %c0_i32, %c0_i32_0 : i32, i32
  }
  func.func @transform_6(%arg0: i32, %arg1: i32) -> (i32, i32) {
    %c0_i32 = arith.constant 0 : i32
    %c0_i32_0 = arith.constant 0 : i32
    %c0_i32_1 = arith.constant 0 : i32
    return %c0_i32, %c0_i32_0 : i32, i32
  }
  func.func @transform_7(%arg0: i32, %arg1: i32) -> (i32, i32) {
    %c0_i32 = arith.constant 0 : i32
    %c0_i32_0 = arith.constant 0 : i32
    %c0_i32_1 = arith.constant 0 : i32
    return %c0_i32, %c0_i32_0 : i32, i32
  }
  func.func @transform_8(%arg0: i32, %arg1: i32) -> (i32, i32) {
    %c0_i32 = arith.constant 0 : i32
    %c0_i32_0 = arith.constant 0 : i32
    %c0_i32_1 = arith.constant 0 : i32
    return %c0_i32, %c0_i32_0 : i32, i32
  }
  func.func @transform_9(%arg0: i32, %arg1: i32) -> (i32, i32, i32) {
    %c0_i32 = arith.constant 0 : i32
    %c0_i32_0 = arith.constant 0 : i32
    return %arg0, %c0_i32, %arg1 : i32, i32, i32
  }
}

</mosaic_0001>

<llo_original>
// kernel: _pointgencon_call.1
$region0: #{_pointgencon_call.1}
  #allocation0 [shape = 'u32[]', space=smem, size = 0x4, offset = 0x4, fixed_abs, tag = 'smem constant byte address 0x4 - core index']
  #allocation1 [shape = 'u32[72,128]{1,0:T(1,128)}', space=vmem, size = 0x9000, scoped, tag = 'internal scratch']
  %s0 = inlined_call_operand.hbm [shape: f32[2,256,512], index: 0, kind: input, shape index: {}]
  %s1 = inlined_call_operand.vmem [shape: bf16[256,256], index: 1, kind: input, shape index: {}]
  %s2 = inlined_call_operand.vmem [shape: f32[256,1], index: 2, kind: input, shape index: {}]
  %s3 = inlined_call_operand.vmem [shape: bf16[128,256], index: 3, kind: input, shape index: {}]
  %s4 = inlined_call_operand.vmem [shape: f32[128,1], index: 4, kind: input, shape index: {}]
  %s5 = inlined_call_operand.vmem [shape: bf16[64,128], index: 5, kind: input, shape index: {}]
  %s6 = inlined_call_operand.vmem [shape: f32[64,1], index: 6, kind: input, shape index: {}]
  %s7 = inlined_call_operand.vmem [shape: bf16[8,64], index: 7, kind: input, shape index: {}]
  %s8 = inlined_call_operand.vmem [shape: f32[8,1], index: 8, kind: input, shape index: {}]
  %s9 = inlined_call_operand.vmem [shape: f32[2,8,512], index: 9, kind: output, shape index: {}]
  %s10 = sld [smem:[#allocation0]]
  $region73: #{_pointgencon_call.1} parent=0
    _
  %s12 = ssub.s32 1, %s10
  %s13 = scalar_select 0, %s12, %s10
  $region1: #{_pointgencon_call.1} parent=0
    #allocation2 [shape = 'u8[1048576]{0}', space=vmem, size = 0x100000, scoped, tag = 'input window, operand 0']
    #allocation3 [shape = 's32[2]{0}', space=sflag, size = 0x8, scoped, tag = 'scoped memory for _pointgencon_call.1']
    %14 = vsyncpa [#allocation3], 0
    %s15 = scalar_lea.sflag [#allocation3], 1
    %16 = vsyncpa %s15, 0
    loop: start=0, step=1, limit=4
    $region2: #{_pointgencon_call.1} parent=1 // loop_pre_header
      _
    $region3: #{_pointgencon_call.1} parent=1 // loop_header
      %s18 = sphi 0, %s22
      %p19 = scmp.ge.s32.totalorder %s18, 4
      %s25 = sphi 0, %s37
      %s26 = sphi 0, %s33
      %s27 = sphi 0, %s25
      %s28 = sphi 0, %s26
      %s29 = sphi 0, %s27
      %s30 = sphi 0, %s28
      %s42 = sphi 0, %s44
      %s45 = sphi 0, %s42
      %s46 = sphi 0, %s45
      %s62 = sphi 0, %s46
      %s66 = sphi 0, %s66
      %s68 = sphi 0, %s66
      %s69 = sphi 0, %s68
      %s83 = sphi 0, %s69
      %s87 = sphi 0, %s87
      %s89 = sphi 0, %s87
      %s90 = sphi 0, %s89
      %s104 = sphi 0, %s90
      %s108 = sphi 0, %s108
      %s110 = sphi 0, %s108
      %s111 = sphi 0, %s110
      %s125 = sphi 0, %s111
      %s129 = sphi 0, %s129
      %s131 = sphi 0, %s129
      %s132 = sphi 0, %s131
      %s146 = sphi 0, %s132
      %s150 = sphi 0, %s150
      %s152 = sphi 0, %s150
      %s153 = sphi 0, %s152
      %s167 = sphi 0, %s153
      %s171 = sphi 0, %s171
      %s173 = sphi 0, %s171
      %s174 = sphi 0, %s173
      %s188 = sphi 0, %s174
      %s192 = sphi 0, %s192
      %s194 = sphi 0, %s192
      %s195 = sphi 0, %s194
      %s209 = sphi 0, %s195
      %s213 = sphi 0, %s213
      %s215 = sphi 0, %s213
      %s216 = sphi 0, %s215
      %s230 = sphi 0, %s216
      %s238 = sphi 0, %s240
      %s241 = sphi 0, %s238
      %s242 = sphi 0, %s241
      %s258 = sphi 0, %s242
    $region4: #{_pointgencon_call.1} parent=1 // loop_header_branch
      %21 = sbr.rel (%p19) target = $region8
    $region5: #{_pointgencon_call.1} parent=1 // loop_body
      %s23 = ssub.s32 %s18, 1
      %s24 = ssub.s32 %s18, 2
      %s31 = sadd.s32 1, %s26
      %p32 = scmp.ge.s32.totalorder %s31, 1
      %s33 = scalar_select %p32, 0, %s31
      %s34 = sadd.s32 1, %s25
      %s35 = scalar_select %p32, %s34, %s25
      %p36 = scmp.ge.s32.totalorder %s35, 2
      %s37 = scalar_select %p36, 0, %s35
      %s38 = ssub.s32 %s25, %s37
      %s39 = ssub.s32 %s26, %s33
      %s40 = sor.u32 %s38, %s39
      %p41 = scmp.eq.s32.totalorder %s40, 0
      %s43 = sadd.s32 %s42, 1
      %s44 = scalar_select %p41, %s42, %s43
      %p47 = pneg %p41
      %p48 = scmp.eq.s32.totalorder %s18, 1
      %p49 = por %p47, %p48
      %p50 = scmp.ne.s32.totalorder %s42, %s45
      %p51 = scmp.eq.s32.totalorder %s18, 0
      %p52 = por %p50, %p51
      %p53 = scmp.ne.s32.totalorder %s42, %s45
      %p54 = scmp.eq.s32.totalorder %s23, 1
      %p55 = por %p53, %p54
      %p56 = scmp.ne.s32.totalorder %s45, %s46
      %p57 = scmp.eq.s32.totalorder %s23, 0
      %p58 = por %p56, %p57
      %p59 = scmp.ne.s32.totalorder %s45, %s46
      %p60 = scmp.eq.s32.totalorder %s24, 1
      %p61 = por %p59, %p60
      %p63 = scmp.ne.s32.totalorder %s46, %s62
      %p64 = scmp.eq.s32.totalorder %s24, 0
      %p65 = por %p63, %p64
      %s67 = sadd.s32 %s66, 1
      %p70 = scmp.eq.s32.totalorder %s18, 1
      %p71 = scmp.ne.s32.totalorder %s66, %s68
      %p72 = scmp.eq.s32.totalorder %s18, 0
      %p73 = por %p71, %p72
      %p74 = scmp.ne.s32.totalorder %s66, %s68
      %p75 = scmp.eq.s32.totalorder %s23, 1
      %p76 = por %p74, %p75
      %p77 = scmp.ne.s32.totalorder %s68, %s69
      %p78 = scmp.eq.s32.totalorder %s23, 0
      %p79 = por %p77, %p78
      %p80 = scmp.ne.s32.totalorder %s68, %s69
      %p81 = scmp.eq.s32.totalorder %s24, 1
      %p82 = por %p80, %p81
      %p84 = scmp.ne.s32.totalorder %s69, %s83
      %p85 = scmp.eq.s32.totalorder %s24, 0
      %p86 = por %p84, %p85
      %s88 = sadd.s32 %s87, 1
      %p91 = scmp.eq.s32.totalorder %s18, 1
      %p92 = scmp.ne.s32.totalorder %s87, %s89
      %p93 = scmp.eq.s32.totalorder %s18, 0
      %p94 = por %p92, %p93
      %p95 = scmp.ne.s32.totalorder %s87, %s89
      %p96 = scmp.eq.s32.totalorder %s23, 1
      %p97 = por %p95, %p96
      %p98 = scmp.ne.s32.totalorder %s89, %s90
      %p99 = scmp.eq.s32.totalorder %s23, 0
      %p100 = por %p98, %p99
      %p101 = scmp.ne.s32.totalorder %s89, %s90
      %p102 = scmp.eq.s32.totalorder %s24, 1
      %p103 = por %p101, %p102
      %p105 = scmp.ne.s32.totalorder %s90, %s104
      %p106 = scmp.eq.s32.totalorder %s24, 0
      %p107 = por %p105, %p106
      %s109 = sadd.s32 %s108, 1
      %p112 = scmp.eq.s32.totalorder %s18, 1
      %p113 = scmp.ne.s32.totalorder %s108, %s110
      %p114 = scmp.eq.s32.totalorder %s18, 0
      %p115 = por %p113, %p114
      %p116 = scmp.ne.s32.totalorder %s108, %s110
      %p117 = scmp.eq.s32.totalorder %s23, 1
      %p118 = por %p116, %p117
      %p119 = scmp.ne.s32.totalorder %s110, %s111
      %p120 = scmp.eq.s32.totalorder %s23, 0
      %p121 = por %p119, %p120
      %p122 = scmp.ne.s32.totalorder %s110, %s111
      %p123 = scmp.eq.s32.totalorder %s24, 1
      %p124 = por %p122, %p123
      %p126 = scmp.ne.s32.totalorder %s111, %s125
      %p127 = scmp.eq.s32.totalorder %s24, 0
      %p128 = por %p126, %p127
      %s130 = sadd.s32 %s129, 1
      %p133 = scmp.eq.s32.totalorder %s18, 1
      %p134 = scmp.ne.s32.totalorder %s129, %s131
      %p135 = scmp.eq.s32.totalorder %s18, 0
      %p136 = por %p134, %p135
      %p137 = scmp.ne.s32.totalorder %s129, %s131
      %p138 = scmp.eq.s32.totalorder %s23, 1
      %p139 = por %p137, %p138
      %p140 = scmp.ne.s32.totalorder %s131, %s132
      %p141 = scmp.eq.s32.totalorder %s23, 0
      %p142 = por %p140, %p141
      %p143 = scmp.ne.s32.totalorder %s131, %s132
      %p144 = scmp.eq.s32.totalorder %s24, 1
      %p145 = por %p143, %p144
      %p147 = scmp.ne.s32.totalorder %s132, %s146
      %p148 = scmp.eq.s32.totalorder %s24, 0
      %p149 = por %p147, %p148
      %s151 = sadd.s32 %s150, 1
      %p154 = scmp.eq.s32.totalorder %s18, 1
      %p155 = scmp.ne.s32.totalorder %s150, %s152
      %p156 = scmp.eq.s32.totalorder %s18, 0
      %p157 = por %p155, %p156
      %p158 = scmp.ne.s32.totalorder %s150, %s152
      %p159 = scmp.eq.s32.totalorder %s23, 1
      %p160 = por %p158, %p159
      %p161 = scmp.ne.s32.totalorder %s152, %s153
      %p162 = scmp.eq.s32.totalorder %s23, 0
      %p163 = por %p161, %p162
      %p164 = scmp.ne.s32.totalorder %s152, %s153
      %p165 = scmp.eq.s32.totalorder %s24, 1
      %p166 = por %p164, %p165
      %p168 = scmp.ne.s32.totalorder %s153, %s167
      %p169 = scmp.eq.s32.totalorder %s24, 0
      %p170 = por %p168, %p169
      %s172 = sadd.s32 %s171, 1
      %p175 = scmp.eq.s32.totalorder %s18, 1
      %p176 = scmp.ne.s32.totalorder %s171, %s173
      %p177 = scmp.eq.s32.totalorder %s18, 0
      %p178 = por %p176, %p177
      %p179 = scmp.ne.s32.totalorder %s171, %s173
      %p180 = scmp.eq.s32.totalorder %s23, 1
      %p181 = por %p179, %p180
      %p182 = scmp.ne.s32.totalorder %s173, %s174
      %p183 = scmp.eq.s32.totalorder %s23, 0
      %p184 = por %p182, %p183
      %p185 = scmp.ne.s32.totalorder %s173, %s174
      %p186 = scmp.eq.s32.totalorder %s24, 1
      %p187 = por %p185, %p186
      %p189 = scmp.ne.s32.totalorder %s174, %s188
      %p190 = scmp.eq.s32.totalorder %s24, 0
      %p191 = por %p189, %p190
      %s193 = sadd.s32 %s192, 1
      %p196 = scmp.eq.s32.totalorder %s18, 1
      %p197 = scmp.ne.s32.totalorder %s192, %s194
      %p198 = scmp.eq.s32.totalorder %s18, 0
      %p199 = por %p197, %p198
      %p200 = scmp.ne.s32.totalorder %s192, %s194
      %p201 = scmp.eq.s32.totalorder %s23, 1
      %p202 = por %p200, %p201
      %p203 = scmp.ne.s32.totalorder %s194, %s195
      %p204 = scmp.eq.s32.totalorder %s23, 0
      %p205 = por %p203, %p204
      %p206 = scmp.ne.s32.totalorder %s194, %s195
      %p207 = scmp.eq.s32.totalorder %s24, 1
      %p208 = por %p206, %p207
      %p210 = scmp.ne.s32.totalorder %s195, %s209
      %p211 = scmp.eq.s32.totalorder %s24, 0
      %p212 = por %p210, %p211
      %s214 = sadd.s32 %s213, 1
      %p217 = scmp.eq.s32.totalorder %s18, 1
      %p218 = scmp.ne.s32.totalorder %s213, %s215
      %p219 = scmp.eq.s32.totalorder %s18, 0
      %p220 = por %p218, %p219
      %p221 = scmp.ne.s32.totalorder %s213, %s215
      %p222 = scmp.eq.s32.totalorder %s23, 1
      %p223 = por %p221, %p222
      %p224 = scmp.ne.s32.totalorder %s215, %s216
      %p225 = scmp.eq.s32.totalorder %s23, 0
      %p226 = por %p224, %p225
      %p227 = scmp.ne.s32.totalorder %s215, %s216
      %p228 = scmp.eq.s32.totalorder %s24, 1
      %p229 = por %p227, %p228
      %p231 = scmp.ne.s32.totalorder %s216, %s230
      %p232 = scmp.eq.s32.totalorder %s24, 0
      %p233 = por %p231, %p232
      %s234 = ssub.s32 %s25, %s37
      %s235 = ssub.s32 %s26, %s33
      %s236 = sor.u32 %s234, %s235
      %p237 = scmp.eq.s32.totalorder %s236, 0
      %s239 = sadd.s32 %s238, 1
      %s240 = scalar_select %p237, %s238, %s239
      %p243 = pneg %p237
      %p244 = scmp.eq.s32.totalorder %s18, 1
      %p245 = por %p243, %p244
      %p246 = scmp.ne.s32.totalorder %s238, %s241
      %p247 = scmp.eq.s32.totalorder %s18, 0
      %p248 = por %p246, %p247
      %p249 = scmp.ne.s32.totalorder %s238, %s241
      %p250 = scmp.eq.s32.totalorder %s23, 1
      %p251 = por %p249, %p250
      %p252 = scmp.ne.s32.totalorder %s241, %s242
      %p253 = scmp.eq.s32.totalorder %s23, 0
      %p254 = por %p252, %p253
      %p255 = scmp.ne.s32.totalorder %s241, %s242
      %p256 = scmp.eq.s32.totalorder %s24, 1
      %p257 = por %p255, %p256
      %p259 = scmp.ne.s32.totalorder %s242, %s258
      %p260 = scmp.eq.s32.totalorder %s24, 0
      %p261 = por %p259, %p260
      %p262 = scmp.le.s32.totalorder 1, %s18
      %p263 = scmp.lt.s32.totalorder %s18, 3
      %p264 = pnand %p262, %p263
      %p265 = pneg %p264
      // Predicated region
      $region9: #{_pointgencon_call.1} parent=5 // pred_check
        _
      $region10: #{_pointgencon_call.1} parent=5 // pred_check_branch
        %267 = sbr.rel (%p264) target = $region12
      $region11: #{_pointgencon_call.1} parent=5 // pred_region
        %s268 = ssub.s32 %s18, 1
        // Predicated region
        $region13: #{_pointgencon_call.1} parent=11 // pred_check
          %p269 = pneg %p79
        $region14: #{_pointgencon_call.1} parent=11 // pred_check_branch
          %271 = sbr.rel (%p269) target = $region16
        $region15: #{_pointgencon_call.1} parent=11 // pred_region
          _
        $region16: #{_pointgencon_call.1} parent=11 // pred_fallthru
          _
        // Predicated region
        $region17: #{_pointgencon_call.1} parent=11 // pred_check
          %p272 = pneg %p100
        $region18: #{_pointgencon_call.1} parent=11 // pred_check_branch
          %274 = sbr.rel (%p272) target = $region20
        $region19: #{_pointgencon_call.1} parent=11 // pred_region
          _
        $region20: #{_pointgencon_call.1} parent=11 // pred_fallthru
          _
        // Predicated region
        $region21: #{_pointgencon_call.1} parent=11 // pred_check
          %p275 = pneg %p121
        $region22: #{_pointgencon_call.1} parent=11 // pred_check_branch
          %277 = sbr.rel (%p275) target = $region24
        $region23: #{_pointgencon_call.1} parent=11 // pred_region
          _
        $region24: #{_pointgencon_call.1} parent=11 // pred_fallthru
          _
        // Predicated region
        $region25: #{_pointgencon_call.1} parent=11 // pred_check
          %p278 = pneg %p142
        $region26: #{_pointgencon_call.1} parent=11 // pred_check_branch
          %280 = sbr.rel (%p278) target = $region28
        $region27: #{_pointgencon_call.1} parent=11 // pred_region
          _
        $region28: #{_pointgencon_call.1} parent=11 // pred_fallthru
          _
        // Predicated region
        $region29: #{_pointgencon_call.1} parent=11 // pred_check
          %p281 = pneg %p163
        $region30: #{_pointgencon_call.1} parent=11 // pred_check_branch
          %283 = sbr.rel (%p281) target = $region32
        $region31: #{_pointgencon_call.1} parent=11 // pred_region
          _
        $region32: #{_pointgencon_call.1} parent=11 // pred_fallthru
          _
        // Predicated region
        $region33: #{_pointgencon_call.1} parent=11 // pred_check
          %p284 = pneg %p184
        $region34: #{_pointgencon_call.1} parent=11 // pred_check_branch
          %286 = sbr.rel (%p284) target = $region36
        $region35: #{_pointgencon_call.1} parent=11 // pred_region
          _
        $region36: #{_pointgencon_call.1} parent=11 // pred_fallthru
          _
        // Predicated region
        $region37: #{_pointgencon_call.1} parent=11 // pred_check
          %p287 = pneg %p205
        $region38: #{_pointgencon_call.1} parent=11 // pred_check_branch
          %289 = sbr.rel (%p287) target = $region40
        $region39: #{_pointgencon_call.1} parent=11 // pred_region
          _
        $region40: #{_pointgencon_call.1} parent=11 // pred_fallthru
          _
        // Predicated region
        $region41: #{_pointgencon_call.1} parent=11 // pred_check
          %p290 = pneg %p226
        $region42: #{_pointgencon_call.1} parent=11 // pred_check_branch
          %292 = sbr.rel (%p290) target = $region44
        $region43: #{_pointgencon_call.1} parent=11 // pred_region
          _
        $region44: #{_pointgencon_call.1} parent=11 // pred_fallthru
          _
      $region12: #{_pointgencon_call.1} parent=5 // pred_fallthru
        _
      %p293 = scmp.lt.s32.totalorder %s18, 2
      // Predicated region
      $region45: #{_pointgencon_call.1} parent=5 // pred_check
        %p294 = pneg %p293
      $region46: #{_pointgencon_call.1} parent=5 // pred_check_branch
        %296 = sbr.rel (%p294) target = $region48
      $region47: #{_pointgencon_call.1} parent=5 // pred_region
        // Predicated region
        $region49: #{_pointgencon_call.1} parent=47 // pred_check
          %p297 = pneg %p52
        $region50: #{_pointgencon_call.1} parent=47 // pred_check_branch
          %299 = sbr.rel (%p297) target = $region52
        $region51: #{_pointgencon_call.1} parent=47 // pred_region
          %s300 = sand.u32 %s42, 1
          %s301 = scalar_lea.sflag [#allocation3], %s300
          %s302 = sand.u32 %s42, 1
          %s303 = smul.addr %s302, 1024
          %s304 = scalar_lea.vmem [#allocation2], %s303
          %s305 = smul.u32 4, %s26
          %307 = vsyncadd %s301, 0
          %s308 = smul.addr %s25, 128
          %s309 = sadd.s32 %s305, %s308
          %s310 = smul.addr %s309, 8
          %s311 = scalar_lea.hbm %s0, %s310
          %s312 = sshll.u32 %s311, 4
          %s313 = int_to_ptr.hbm [resolvable:$true] %s312
          %s314 = sshll.u32 %s304, 4
          %s315 = int_to_ptr.vmem [resolvable:$true] %s314
          %320 = dma.hbm_to_vmem [thread:$0]  %s313, 16384, %s315, %s301, 512, 512, 32
        $region52: #{_pointgencon_call.1} parent=47 // pred_fallthru
          _
      $region48: #{_pointgencon_call.1} parent=5 // pred_fallthru
        _
      %p321 = scmp.le.s32.totalorder 1, %s18
      %p322 = scmp.lt.s32.totalorder %s18, 3
      %p323 = pnand %p321, %p322
      %p324 = pneg %p323
      // Predicated region
      $region53: #{_pointgencon_call.1} parent=5 // pred_check
        _
      $region54: #{_pointgencon_call.1} parent=5 // pred_check_branch
        %326 = sbr.rel (%p323) target = $region56
      $region55: #{_pointgencon_call.1} parent=5 // pred_region
        %s327 = ssub.s32 %s18, 1
        %s328 = sand.u32 %s45, 1
        %s329 = scalar_lea.sflag [#allocation3], %s328
        %s330 = sand.u32 %s45, 1
        %s331 = smul.addr %s330, 1024
        %s332 = scalar_lea.vmem [#allocation2], %s331
        // Predicated region
        $region57: #{_pointgencon_call.1} parent=55 // pred_check
          %p333 = pneg %p58
        $region58: #{_pointgencon_call.1} parent=55 // pred_check_branch
          %335 = sbr.rel (%p333) target = $region60
        $region59: #{_pointgencon_call.1} parent=55 // pred_region
          %337 = dma.done %s329, 16384
        $region60: #{_pointgencon_call.1} parent=55 // pred_fallthru
          _
        %s338 = sand.u32 %s45, 1
        %s339 = scalar_lea.sflag [#allocation3], %s338
        %s340 = sand.u32 %s45, 1
        %s341 = smul.addr %s340, 1024
        %s342 = scalar_lea.vmem [#allocation2], %s341
        %p343 = pneg %p58
        %p344 = pneg %p55
        %p345 = pneg %p79
        %p346 = pneg %p76
        %p347 = pneg %p100
        %p348 = pneg %p97
        %p349 = pneg %p121
        %p350 = pneg %p118
        %p351 = pneg %p142
        %p352 = pneg %p139
        %p353 = pneg %p163
        %p354 = pneg %p160
        %p355 = pneg %p184
        %p356 = pneg %p181
        %p357 = pneg %p205
        %p358 = pneg %p202
        %p359 = pneg %p226
        %p360 = pneg %p223
        %p361 = pneg %p254
        %p362 = pneg %p251
        %s363 = smul.u32 4, %s28
        %p364 = scmp.lt.s32.totalorder %s27, 1
        %s365 = scalar_select %p364, %s27, 1
        %p366 = scmp.lt.s32.totalorder %s363, 3
        %s367 = scalar_select %p366, %s363, 3
        %s368 = smul.addr %s365, 4
        %s369 = sadd.s32 %s367, %s368
        %s370 = smul.addr %s369, 8
        %s371 = scalar_lea.vmem %s9, %s370
        %s372 = smul.u32 4, %s28
        %s373 = smul.u32 4, %s28
        %p374 = scmp.lt.s32.totalorder %s27, 1
        %s375 = scalar_select %p374, %s27, 1
        %p376 = scmp.lt.s32.totalorder %s373, 3
        %s377 = scalar_select %p376, %s373, 3
        %s378 = smul.addr %s375, 4
        %s379 = sadd.s32 %s377, %s378
        %s380 = smul.addr %s379, 8
        %s381 = scalar_lea.vmem %s9, %s380
        %s382 = smul.u32 4, %s28
        %v384 = vld [vmem:[%s332] sm:$0xff]
        %v385 = vld [vmem:[%s332 + $0x8] sm:$0xff]
        %v386 = vld [vmem:[%s332 + $0x10] sm:$0xff]
        %v387 = vld [vmem:[%s332 + $0x18] sm:$0xff]
        %v388 = vld [vmem:[%s332 + $0x20] sm:$0xff]
        %v389 = vld [vmem:[%s332 + $0x28] sm:$0xff]
        %v390 = vld [vmem:[%s332 + $0x30] sm:$0xff]
        %v391 = vld [vmem:[%s332 + $0x38] sm:$0xff]
        %v392 = vld [vmem:[%s332 + $0x40] sm:$0xff]
        %v393 = vld [vmem:[%s332 + $0x48] sm:$0xff]
        %v394 = vld [vmem:[%s332 + $0x50] sm:$0xff]
        %v395 = vld [vmem:[%s332 + $0x58] sm:$0xff]
        %v396 = vld [vmem:[%s332 + $0x60] sm:$0xff]
        %v397 = vld [vmem:[%s332 + $0x68] sm:$0xff]
        %v398 = vld [vmem:[%s332 + $0x70] sm:$0xff]
        %v399 = vld [vmem:[%s332 + $0x78] sm:$0xff]
        %v400 = vld [vmem:[%s332 + $0x80] sm:$0xff]
        %v401 = vld [vmem:[%s332 + $0x88] sm:$0xff]
        %v402 = vld [vmem:[%s332 + $0x90] sm:$0xff]
        %v403 = vld [vmem:[%s332 + $0x98] sm:$0xff]
        %v404 = vld [vmem:[%s332 + $0xa0] sm:$0xff]
        %v405 = vld [vmem:[%s332 + $0xa8] sm:$0xff]
        %v406 = vld [vmem:[%s332 + $0xb0] sm:$0xff]
        %v407 = vld [vmem:[%s332 + $0xb8] sm:$0xff]
        %v408 = vld [vmem:[%s332 + $0xc0] sm:$0xff]
        %v409 = vld [vmem:[%s332 + $0xc8] sm:$0xff]
        %v410 = vld [vmem:[%s332 + $0xd0] sm:$0xff]
        %v411 = vld [vmem:[%s332 + $0xd8] sm:$0xff]
        %v412 = vld [vmem:[%s332 + $0xe0] sm:$0xff]
        %v413 = vld [vmem:[%s332 + $0xe8] sm:$0xff]
        %v414 = vld [vmem:[%s332 + $0xf0] sm:$0xff]
        %v415 = vld [vmem:[%s332 + $0xf8] sm:$0xff]
        %v416 = vld [vmem:[%s332 + $0x100] sm:$0xff]
        %v417 = vld [vmem:[%s332 + $0x108] sm:$0xff]
        %v418 = vld [vmem:[%s332 + $0x110] sm:$0xff]
        %v419 = vld [vmem:[%s332 + $0x118] sm:$0xff]
        %v420 = vld [vmem:[%s332 + $0x120] sm:$0xff]
        %v421 = vld [vmem:[%s332 + $0x128] sm:$0xff]
        %v422 = vld [vmem:[%s332 + $0x130] sm:$0xff]
        %v423 = vld [vmem:[%s332 + $0x138] sm:$0xff]
        %v424 = vld [vmem:[%s332 + $0x140] sm:$0xff]
        %v425 = vld [vmem:[%s332 + $0x148] sm:$0xff]
        %v426 = vld [vmem:[%s332 + $0x150] sm:$0xff]
        %v427 = vld [vmem:[%s332 + $0x158] sm:$0xff]
        %v428 = vld [vmem:[%s332 + $0x160] sm:$0xff]
        %v429 = vld [vmem:[%s332 + $0x168] sm:$0xff]
        %v430 = vld [vmem:[%s332 + $0x170] sm:$0xff]
        %v431 = vld [vmem:[%s332 + $0x178] sm:$0xff]
        %v432 = vld [vmem:[%s332 + $0x180] sm:$0xff]
        %v433 = vld [vmem:[%s332 + $0x188] sm:$0xff]
        %v434 = vld [vmem:[%s332 + $0x190] sm:$0xff]
        %v435 = vld [vmem:[%s332 + $0x198] sm:$0xff]
        %v436 = vld [vmem:[%s332 + $0x1a0] sm:$0xff]
        %v437 = vld [vmem:[%s332 + $0x1a8] sm:$0xff]
        %v438 = vld [vmem:[%s332 + $0x1b0] sm:$0xff]
        %v439 = vld [vmem:[%s332 + $0x1b8] sm:$0xff]
        %v440 = vld [vmem:[%s332 + $0x1c0] sm:$0xff]
        %v441 = vld [vmem:[%s332 + $0x1c8] sm:$0xff]
        %v442 = vld [vmem:[%s332 + $0x1d0] sm:$0xff]
        %v443 = vld [vmem:[%s332 + $0x1d8] sm:$0xff]
        %v444 = vld [vmem:[%s332 + $0x1e0] sm:$0xff]
        %v445 = vld [vmem:[%s332 + $0x1e8] sm:$0xff]
        %v446 = vld [vmem:[%s332 + $0x1f0] sm:$0xff]
        %v447 = vld [vmem:[%s332 + $0x1f8] sm:$0xff]
        %v448 = vld [vmem:[%s332 + $0x200] sm:$0xff]
        %v449 = vld [vmem:[%s332 + $0x208] sm:$0xff]
        %v450 = vld [vmem:[%s332 + $0x210] sm:$0xff]
        %v451 = vld [vmem:[%s332 + $0x218] sm:$0xff]
        %v452 = vld [vmem:[%s332 + $0x220] sm:$0xff]
        %v453 = vld [vmem:[%s332 + $0x228] sm:$0xff]
        %v454 = vld [vmem:[%s332 + $0x230] sm:$0xff]
        %v455 = vld [vmem:[%s332 + $0x238] sm:$0xff]
        %v456 = vld [vmem:[%s332 + $0x240] sm:$0xff]
        %v457 = vld [vmem:[%s332 + $0x248] sm:$0xff]
        %v458 = vld [vmem:[%s332 + $0x250] sm:$0xff]
        %v459 = vld [vmem:[%s332 + $0x258] sm:$0xff]
        %v460 = vld [vmem:[%s332 + $0x260] sm:$0xff]
        %v461 = vld [vmem:[%s332 + $0x268] sm:$0xff]
        %v462 = vld [vmem:[%s332 + $0x270] sm:$0xff]
        %v463 = vld [vmem:[%s332 + $0x278] sm:$0xff]
        %v464 = vld [vmem:[%s332 + $0x280] sm:$0xff]
        %v465 = vld [vmem:[%s332 + $0x288] sm:$0xff]
        %v466 = vld [vmem:[%s332 + $0x290] sm:$0xff]
        %v467 = vld [vmem:[%s332 + $0x298] sm:$0xff]
        %v468 = vld [vmem:[%s332 + $0x2a0] sm:$0xff]
        %v469 = vld [vmem:[%s332 + $0x2a8] sm:$0xff]
        %v470 = vld [vmem:[%s332 + $0x2b0] sm:$0xff]
        %v471 = vld [vmem:[%s332 + $0x2b8] sm:$0xff]
        %v472 = vld [vmem:[%s332 + $0x2c0] sm:$0xff]
        %v473 = vld [vmem:[%s332 + $0x2c8] sm:$0xff]
        %v474 = vld [vmem:[%s332 + $0x2d0] sm:$0xff]
        %v475 = vld [vmem:[%s332 + $0x2d8] sm:$0xff]
        %v476 = vld [vmem:[%s332 + $0x2e0] sm:$0xff]
        %v477 = vld [vmem:[%s332 + $0x2e8] sm:$0xff]
        %v478 = vld [vmem:[%s332 + $0x2f0] sm:$0xff]
        %v479 = vld [vmem:[%s332 + $0x2f8] sm:$0xff]
        %v480 = vld [vmem:[%s332 + $0x300] sm:$0xff]
        %v481 = vld [vmem:[%s332 + $0x308] sm:$0xff]
        %v482 = vld [vmem:[%s332 + $0x310] sm:$0xff]
        %v483 = vld [vmem:[%s332 + $0x318] sm:$0xff]
        %v484 = vld [vmem:[%s332 + $0x320] sm:$0xff]
        %v485 = vld [vmem:[%s332 + $0x328] sm:$0xff]
        %v486 = vld [vmem:[%s332 + $0x330] sm:$0xff]
        %v487 = vld [vmem:[%s332 + $0x338] sm:$0xff]
        %v488 = vld [vmem:[%s332 + $0x340] sm:$0xff]
        %v489 = vld [vmem:[%s332 + $0x348] sm:$0xff]
        %v490 = vld [vmem:[%s332 + $0x350] sm:$0xff]
        %v491 = vld [vmem:[%s332 + $0x358] sm:$0xff]
        %v492 = vld [vmem:[%s332 + $0x360] sm:$0xff]
        %v493 = vld [vmem:[%s332 + $0x368] sm:$0xff]
        %v494 = vld [vmem:[%s332 + $0x370] sm:$0xff]
        %v495 = vld [vmem:[%s332 + $0x378] sm:$0xff]
        %v496 = vld [vmem:[%s332 + $0x380] sm:$0xff]
        %v497 = vld [vmem:[%s332 + $0x388] sm:$0xff]
        %v498 = vld [vmem:[%s332 + $0x390] sm:$0xff]
        %v499 = vld [vmem:[%s332 + $0x398] sm:$0xff]
        %v500 = vld [vmem:[%s332 + $0x3a0] sm:$0xff]
        %v501 = vld [vmem:[%s332 + $0x3a8] sm:$0xff]
        %v502 = vld [vmem:[%s332 + $0x3b0] sm:$0xff]
        %v503 = vld [vmem:[%s332 + $0x3b8] sm:$0xff]
        %v504 = vld [vmem:[%s332 + $0x3c0] sm:$0xff]
        %v505 = vld [vmem:[%s332 + $0x3c8] sm:$0xff]
        %v506 = vld [vmem:[%s332 + $0x3d0] sm:$0xff]
        %v507 = vld [vmem:[%s332 + $0x3d8] sm:$0xff]
        %v508 = vld [vmem:[%s332 + $0x3e0] sm:$0xff]
        %v509 = vld [vmem:[%s332 + $0x3e8] sm:$0xff]
        %v510 = vld [vmem:[%s332 + $0x3f0] sm:$0xff]
        %v511 = vld [vmem:[%s332 + $0x3f8] sm:$0xff]
        %v512 = vpack.c.bf16 %v388, %v384
        %v513 = vpack.c.bf16 %v389, %v385
        %v514 = vpack.c.bf16 %v390, %v386
        %v515 = vpack.c.bf16 %v391, %v387
        %v516 = vpack.c.bf16 %v396, %v392
        %v517 = vpack.c.bf16 %v397, %v393
        %v518 = vpack.c.bf16 %v398, %v394
        %v519 = vpack.c.bf16 %v399, %v395
        %v520 = vpack.c.bf16 %v404, %v400
        %v521 = vpack.c.bf16 %v405, %v401
        %v522 = vpack.c.bf16 %v406, %v402
        %v523 = vpack.c.bf16 %v407, %v403
        %v524 = vpack.c.bf16 %v412, %v408
        %v525 = vpack.c.bf16 %v413, %v409
        %v526 = vpack.c.bf16 %v414, %v410
        %v527 = vpack.c.bf16 %v415, %v411
        %v528 = vpack.c.bf16 %v420, %v416
        %v529 = vpack.c.bf16 %v421, %v417
        %v530 = vpack.c.bf16 %v422, %v418
        %v531 = vpack.c.bf16 %v423, %v419
        %v532 = vpack.c.bf16 %v428, %v424
        %v533 = vpack.c.bf16 %v429, %v425
        %v534 = vpack.c.bf16 %v430, %v426
        %v535 = vpack.c.bf16 %v431, %v427
        %v536 = vpack.c.bf16 %v436, %v432
        %v537 = vpack.c.bf16 %v437, %v433
        %v538 = vpack.c.bf16 %v438, %v434
        %v539 = vpack.c.bf16 %v439, %v435
        %v540 = vpack.c.bf16 %v444, %v440
        %v541 = vpack.c.bf16 %v445, %v441
        %v542 = vpack.c.bf16 %v446, %v442
        %v543 = vpack.c.bf16 %v447, %v443
        %v544 = vpack.c.bf16 %v452, %v448
        %v545 = vpack.c.bf16 %v453, %v449
        %v546 = vpack.c.bf16 %v454, %v450
        %v547 = vpack.c.bf16 %v455, %v451
        %v548 = vpack.c.bf16 %v460, %v456
        %v549 = vpack.c.bf16 %v461, %v457
        %v550 = vpack.c.bf16 %v462, %v458
        %v551 = vpack.c.bf16 %v463, %v459
        %v552 = vpack.c.bf16 %v468, %v464
        %v553 = vpack.c.bf16 %v469, %v465
        %v554 = vpack.c.bf16 %v470, %v466
        %v555 = vpack.c.bf16 %v471, %v467
        %v556 = vpack.c.bf16 %v476, %v472
        %v557 = vpack.c.bf16 %v477, %v473
        %v558 = vpack.c.bf16 %v478, %v474
        %v559 = vpack.c.bf16 %v479, %v475
        %v560 = vpack.c.bf16 %v484, %v480
        %v561 = vpack.c.bf16 %v485, %v481
        %v562 = vpack.c.bf16 %v486, %v482
        %v563 = vpack.c.bf16 %v487, %v483
        %v564 = vpack.c.bf16 %v492, %v488
        %v565 = vpack.c.bf16 %v493, %v489
        %v566 = vpack.c.bf16 %v494, %v490
        %v567 = vpack.c.bf16 %v495, %v491
        %v568 = vpack.c.bf16 %v500, %v496
        %v569 = vpack.c.bf16 %v501, %v497
        %v570 = vpack.c.bf16 %v502, %v498
        %v571 = vpack.c.bf16 %v503, %v499
        %v572 = vpack.c.bf16 %v508, %v504
        %v573 = vpack.c.bf16 %v509, %v505
        %v574 = vpack.c.bf16 %v510, %v506
        %v575 = vpack.c.bf16 %v511, %v507
        %v576 = vld [vmem:[%s1] sm:$0xff]
        %v577 = vld [vmem:[%s1 + $0x8] sm:$0xff]
        %v578 = vld [vmem:[%s1 + $0x10] sm:$0xff]
        %v579 = vld [vmem:[%s1 + $0x18] sm:$0xff]
        %v580 = vld [vmem:[%s1 + $0x20] sm:$0xff]
        %v581 = vld [vmem:[%s1 + $0x28] sm:$0xff]
        %v582 = vld [vmem:[%s1 + $0x30] sm:$0xff]
        %v583 = vld [vmem:[%s1 + $0x38] sm:$0xff]
        %v584 = vld [vmem:[%s1 + $0x40] sm:$0xff]
        %v585 = vld [vmem:[%s1 + $0x48] sm:$0xff]
        %v586 = vld [vmem:[%s1 + $0x50] sm:$0xff]
        %v587 = vld [vmem:[%s1 + $0x58] sm:$0xff]
        %v588 = vld [vmem:[%s1 + $0x60] sm:$0xff]
        %v589 = vld [vmem:[%s1 + $0x68] sm:$0xff]
        %v590 = vld [vmem:[%s1 + $0x70] sm:$0xff]
        %v591 = vld [vmem:[%s1 + $0x78] sm:$0xff]
        %v592 = vld [vmem:[%s1 + $0x80] sm:$0xff]
        %v593 = vld [vmem:[%s1 + $0x88] sm:$0xff]
        %v594 = vld [vmem:[%s1 + $0x90] sm:$0xff]
        %v595 = vld [vmem:[%s1 + $0x98] sm:$0xff]
        %v596 = vld [vmem:[%s1 + $0xa0] sm:$0xff]
        %v597 = vld [vmem:[%s1 + $0xa8] sm:$0xff]
        %v598 = vld [vmem:[%s1 + $0xb0] sm:$0xff]
        %v599 = vld [vmem:[%s1 + $0xb8] sm:$0xff]
        %v600 = vld [vmem:[%s1 + $0xc0] sm:$0xff]
        %v601 = vld [vmem:[%s1 + $0xc8] sm:$0xff]
        %v602 = vld [vmem:[%s1 + $0xd0] sm:$0xff]
        %v603 = vld [vmem:[%s1 + $0xd8] sm:$0xff]
        %v604 = vld [vmem:[%s1 + $0xe0] sm:$0xff]
        %v605 = vld [vmem:[%s1 + $0xe8] sm:$0xff]
        %v606 = vld [vmem:[%s1 + $0xf0] sm:$0xff]
        %v607 = vld [vmem:[%s1 + $0xf8] sm:$0xff]
        %v608 = vld [vmem:[%s2] sm:$0xff]
        %v609 = vld [vmem:[%s2 + $0x8] sm:$0xff]
        %v610 = vld [vmem:[%s2 + $0x10] sm:$0xff]
        %v611 = vld [vmem:[%s2 + $0x18] sm:$0xff]
        %v612 = vld [vmem:[%s2 + $0x20] sm:$0xff]
        %v613 = vld [vmem:[%s2 + $0x28] sm:$0xff]
        %v614 = vld [vmem:[%s2 + $0x30] sm:$0xff]
        %v615 = vld [vmem:[%s2 + $0x38] sm:$0xff]
        %v616 = vld [vmem:[%s2 + $0x40] sm:$0xff]
        %v617 = vld [vmem:[%s2 + $0x48] sm:$0xff]
        %v618 = vld [vmem:[%s2 + $0x50] sm:$0xff]
        %v619 = vld [vmem:[%s2 + $0x58] sm:$0xff]
        %v620 = vld [vmem:[%s2 + $0x60] sm:$0xff]
        %v621 = vld [vmem:[%s2 + $0x68] sm:$0xff]
        %v622 = vld [vmem:[%s2 + $0x70] sm:$0xff]
        %v623 = vld [vmem:[%s2 + $0x78] sm:$0xff]
        %v624 = vld [vmem:[%s2 + $0x80] sm:$0xff]
        %v625 = vld [vmem:[%s2 + $0x88] sm:$0xff]
        %v626 = vld [vmem:[%s2 + $0x90] sm:$0xff]
        %v627 = vld [vmem:[%s2 + $0x98] sm:$0xff]
        %v628 = vld [vmem:[%s2 + $0xa0] sm:$0xff]
        %v629 = vld [vmem:[%s2 + $0xa8] sm:$0xff]
        %v630 = vld [vmem:[%s2 + $0xb0] sm:$0xff]
        %v631 = vld [vmem:[%s2 + $0xb8] sm:$0xff]
        %v632 = vld [vmem:[%s2 + $0xc0] sm:$0xff]
        %v633 = vld [vmem:[%s2 + $0xc8] sm:$0xff]
        %v634 = vld [vmem:[%s2 + $0xd0] sm:$0xff]
        %v635 = vld [vmem:[%s2 + $0xd8] sm:$0xff]
        %v636 = vld [vmem:[%s2 + $0xe0] sm:$0xff]
        %v637 = vld [vmem:[%s2 + $0xe8] sm:$0xff]
        %v638 = vld [vmem:[%s2 + $0xf0] sm:$0xff]
        %v639 = vld [vmem:[%s2 + $0xf8] sm:$0xff]
        %641 = vset.pattern.permute.xlu0 0
        %642 = vperm.xlu0 %641, %v608
        %v643 = vpop.permute.xlu0 %642
        %646 = vset.pattern.permute.xlu0 0
        %647 = vperm.xlu0 %646, %v609
        %v648 = vpop.permute.xlu0 %647
        %651 = vset.pattern.permute.xlu0 0
        %652 = vperm.xlu0 %651, %v610
        %v653 = vpop.permute.xlu0 %652
        %656 = vset.pattern.permute.xlu0 0
        %657 = vperm.xlu0 %656, %v611
        %v658 = vpop.permute.xlu0 %657
        %661 = vset.pattern.permute.xlu0 0
        %662 = vperm.xlu0 %661, %v612
        %v663 = vpop.permute.xlu0 %662
        %666 = vset.pattern.permute.xlu0 0
        %667 = vperm.xlu0 %666, %v613
        %v668 = vpop.permute.xlu0 %667
        %671 = vset.pattern.permute.xlu0 0
        %672 = vperm.xlu0 %671, %v614
        %v673 = vpop.permute.xlu0 %672
        %676 = vset.pattern.permute.xlu0 0
        %677 = vperm.xlu0 %676, %v615
        %v678 = vpop.permute.xlu0 %677
        %681 = vset.pattern.permute.xlu0 0
        %682 = vperm.xlu0 %681, %v616
        %v683 = vpop.permute.xlu0 %682
        %686 = vset.pattern.permute.xlu0 0
        %687 = vperm.xlu0 %686, %v617
        %v688 = vpop.permute.xlu0 %687
        %691 = vset.pattern.permute.xlu0 0
        %692 = vperm.xlu0 %691, %v618
        %v693 = vpop.permute.xlu0 %692
        %696 = vset.pattern.permute.xlu0 0
        %697 = vperm.xlu0 %696, %v619
        %v698 = vpop.permute.xlu0 %697
        %701 = vset.pattern.permute.xlu0 0
        %702 = vperm.xlu0 %701, %v620
        %v703 = vpop.permute.xlu0 %702
        %706 = vset.pattern.permute.xlu0 0
        %707 = vperm.xlu0 %706, %v621
        %v708 = vpop.permute.xlu0 %707
        %711 = vset.pattern.permute.xlu0 0
        %712 = vperm.xlu0 %711, %v622
        %v713 = vpop.permute.xlu0 %712
        %716 = vset.pattern.permute.xlu0 0
        %717 = vperm.xlu0 %716, %v623
        %v718 = vpop.permute.xlu0 %717
        %721 = vset.pattern.permute.xlu0 0
        %722 = vperm.xlu0 %721, %v624
        %v723 = vpop.permute.xlu0 %722
        %726 = vset.pattern.permute.xlu0 0
        %727 = vperm.xlu0 %726, %v625
        %v728 = vpop.permute.xlu0 %727
        %731 = vset.pattern.permute.xlu0 0
        %732 = vperm.xlu0 %731, %v626
        %v733 = vpop.permute.xlu0 %732
        %736 = vset.pattern.permute.xlu0 0
        %737 = vperm.xlu0 %736, %v627
        %v738 = vpop.permute.xlu0 %737
        %741 = vset.pattern.permute.xlu0 0
        %742 = vperm.xlu0 %741, %v628
        %v743 = vpop.permute.xlu0 %742
        %746 = vset.pattern.permute.xlu0 0
        %747 = vperm.xlu0 %746, %v629
        %v748 = vpop.permute.xlu0 %747
        %751 = vset.pattern.permute.xlu0 0
        %752 = vperm.xlu0 %751, %v630
        %v753 = vpop.permute.xlu0 %752
        %756 = vset.pattern.permute.xlu0 0
        %757 = vperm.xlu0 %756, %v631
        %v758 = vpop.permute.xlu0 %757
        %761 = vset.pattern.permute.xlu0 0
        %762 = vperm.xlu0 %761, %v632
        %v763 = vpop.permute.xlu0 %762
        %766 = vset.pattern.permute.xlu0 0
        %767 = vperm.xlu0 %766, %v633
        %v768 = vpop.permute.xlu0 %767
        %771 = vset.pattern.permute.xlu0 0
        %772 = vperm.xlu0 %771, %v634
        %v773 = vpop.permute.xlu0 %772
        %776 = vset.pattern.permute.xlu0 0
        %777 = vperm.xlu0 %776, %v635
        %v778 = vpop.permute.xlu0 %777
        %781 = vset.pattern.permute.xlu0 0
        %782 = vperm.xlu0 %781, %v636
        %v783 = vpop.permute.xlu0 %782
        %786 = vset.pattern.permute.xlu0 0
        %787 = vperm.xlu0 %786, %v637
        %v788 = vpop.permute.xlu0 %787
        %791 = vset.pattern.permute.xlu0 0
        %792 = vperm.xlu0 %791, %v638
        %v793 = vpop.permute.xlu0 %792
        %796 = vset.pattern.permute.xlu0 0
        %797 = vperm.xlu0 %796, %v639
        %v798 = vpop.permute.xlu0 %797
        %v832 = vunpack.c.l.b16 %v576
        %v833 = vunpack.c.h.b16 %v576
        %v834 = vunpack.c.l.b16 %v577
        %v835 = vunpack.c.h.b16 %v577
        %v836 = vunpack.c.l.b16 %v578
        %v837 = vunpack.c.h.b16 %v578
        %v838 = vunpack.c.l.b16 %v579
        %v839 = vunpack.c.h.b16 %v579
        %v840 = vunpack.c.l.b16 %v580
        %v841 = vunpack.c.h.b16 %v580
        %v842 = vunpack.c.l.b16 %v581
        %v843 = vunpack.c.h.b16 %v581
        %v844 = vunpack.c.l.b16 %v582
        %v845 = vunpack.c.h.b16 %v582
        %v846 = vunpack.c.l.b16 %v583
        %v847 = vunpack.c.h.b16 %v583
        %v848 = vunpack.c.l.b16 %v584
        %v849 = vunpack.c.h.b16 %v584
        %v850 = vunpack.c.l.b16 %v585
        %v851 = vunpack.c.h.b16 %v585
        %v852 = vunpack.c.l.b16 %v586
        %v853 = vunpack.c.h.b16 %v586
        %v854 = vunpack.c.l.b16 %v587
        %v855 = vunpack.c.h.b16 %v587
        %v856 = vunpack.c.l.b16 %v588
        %v857 = vunpack.c.h.b16 %v588
        %v858 = vunpack.c.l.b16 %v589
        %v859 = vunpack.c.h.b16 %v589
        %v860 = vunpack.c.l.b16 %v590
        %v861 = vunpack.c.h.b16 %v590
        %v862 = vunpack.c.l.b16 %v591
        %v863 = vunpack.c.h.b16 %v591
        %v864 = vunpack.c.l.b16 %v592
        %v865 = vunpack.c.h.b16 %v592
        %v866 = vunpack.c.l.b16 %v593
        %v867 = vunpack.c.h.b16 %v593
        %v868 = vunpack.c.l.b16 %v594
        %v869 = vunpack.c.h.b16 %v594
        %v870 = vunpack.c.l.b16 %v595
        %v871 = vunpack.c.h.b16 %v595
        %v872 = vunpack.c.l.b16 %v596
        %v873 = vunpack.c.h.b16 %v596
        %v874 = vunpack.c.l.b16 %v597
        %v875 = vunpack.c.h.b16 %v597
        %v876 = vunpack.c.l.b16 %v598
        %v877 = vunpack.c.h.b16 %v598
        %v878 = vunpack.c.l.b16 %v599
        %v879 = vunpack.c.h.b16 %v599
        %v880 = vunpack.c.l.b16 %v600
        %v881 = vunpack.c.h.b16 %v600
        %v882 = vunpack.c.l.b16 %v601
        %v883 = vunpack.c.h.b16 %v601
        %v884 = vunpack.c.l.b16 %v602
        %v885 = vunpack.c.h.b16 %v602
        %v886 = vunpack.c.l.b16 %v603
        %v887 = vunpack.c.h.b16 %v603
        %v888 = vunpack.c.l.b16 %v604
        %v889 = vunpack.c.h.b16 %v604
        %v890 = vunpack.c.l.b16 %v605
        %v891 = vunpack.c.h.b16 %v605
        %v892 = vunpack.c.l.b16 %v606
        %v893 = vunpack.c.h.b16 %v606
        %v894 = vunpack.c.l.b16 %v607
        %v895 = vunpack.c.h.b16 %v607
        %v896 = vpack.c.b16 %v834, %v832
        %v897 = vpack.c.b16 %v835, %v833
        %v898 = vpack.c.b16 %v838, %v836
        %v899 = vpack.c.b16 %v839, %v837
        %v900 = vpack.c.b16 %v842, %v840
        %v901 = vpack.c.b16 %v843, %v841
        %v902 = vpack.c.b16 %v846, %v844
        %v903 = vpack.c.b16 %v847, %v845
        %v904 = vpack.c.b16 %v850, %v848
        %v905 = vpack.c.b16 %v851, %v849
        %v906 = vpack.c.b16 %v854, %v852
        %v907 = vpack.c.b16 %v855, %v853
        %v908 = vpack.c.b16 %v858, %v856
        %v909 = vpack.c.b16 %v859, %v857
        %v910 = vpack.c.b16 %v862, %v860
        %v911 = vpack.c.b16 %v863, %v861
        %v912 = vpack.c.b16 %v866, %v864
        %v913 = vpack.c.b16 %v867, %v865
        %v914 = vpack.c.b16 %v870, %v868
        %v915 = vpack.c.b16 %v871, %v869
        %v916 = vpack.c.b16 %v874, %v872
        %v917 = vpack.c.b16 %v875, %v873
        %v918 = vpack.c.b16 %v878, %v876
        %v919 = vpack.c.b16 %v879, %v877
        %v920 = vpack.c.b16 %v882, %v880
        %v921 = vpack.c.b16 %v883, %v881
        %v922 = vpack.c.b16 %v886, %v884
        %v923 = vpack.c.b16 %v887, %v885
        %v924 = vpack.c.b16 %v890, %v888
        %v925 = vpack.c.b16 %v891, %v889
        %v926 = vpack.c.b16 %v894, %v892
        %v927 = vpack.c.b16 %v895, %v893
        %960 = vmatpush.bf16.msra.mxu0 %v540
        %961 = vmatpush.bf16.msra.mxu0 %v536
        %962 = vmatpush.bf16.msra.mxu0 %v532
        %963 = vmatpush.bf16.msra.mxu0 %v528
        %964 = vmatpush.bf16.msra.mxu0 %v524
        %965 = vmatpush.bf16.msra.mxu0 %v520
        %966 = vmatpush.bf16.msra.mxu0 %v516
        %967 = vmatpush.bf16.msra.mxu0 %v512
        %968 = vmatmul.bf16.gmra.mxu0 %v896
        %v969 = vpop.f32.mrf.mxu0
        %v970 = vadd.f32 %v643, %v969
        %v971 = vpop.f32.mrf.mxu0
        %v972 = vadd.f32 %v648, %v971
        %973 = vmatmul.bf16.gmra.mxu0 %v898
        %v974 = vpop.f32.mrf.mxu0
        %v975 = vadd.f32 %v653, %v974
        %v976 = vpop.f32.mrf.mxu0
        %v977 = vadd.f32 %v658, %v976
        %978 = vmatmul.bf16.gmra.mxu0 %v900
        %v979 = vpop.f32.mrf.mxu0
        %v980 = vadd.f32 %v663, %v979
        %v981 = vpop.f32.mrf.mxu0
        %v982 = vadd.f32 %v668, %v981
        %983 = vmatmul.bf16.gmra.mxu0 %v902
        %v984 = vpop.f32.mrf.mxu0
        %v985 = vadd.f32 %v673, %v984
        %v986 = vpop.f32.mrf.mxu0
        %v987 = vadd.f32 %v678, %v986
        %988 = vmatmul.bf16.gmra.mxu0 %v904
        %v989 = vpop.f32.mrf.mxu0
        %v990 = vadd.f32 %v683, %v989
        %v991 = vpop.f32.mrf.mxu0
        %v992 = vadd.f32 %v688, %v991
        %993 = vmatmul.bf16.gmra.mxu0 %v906
        %v994 = vpop.f32.mrf.mxu0
        %v995 = vadd.f32 %v693, %v994
        %v996 = vpop.f32.mrf.mxu0
        %v997 = vadd.f32 %v698, %v996
        %998 = vmatmul.bf16.gmra.mxu0 %v908
        %v999 = vpop.f32.mrf.mxu0
        %v1000 = vadd.f32 %v703, %v999
        %v1001 = vpop.f32.mrf.mxu0
        %v1002 = vadd.f32 %v708, %v1001
        %1003 = vmatmul.bf16.gmra.mxu0 %v910
        %v1004 = vpop.f32.mrf.mxu0
        %v1005 = vadd.f32 %v713, %v1004
        %v1006 = vpop.f32.mrf.mxu0
        %v1007 = vadd.f32 %v718, %v1006
        %1008 = vmatmul.bf16.gmra.mxu0 %v912
        %v1009 = vpop.f32.mrf.mxu0
        %v1010 = vadd.f32 %v723, %v1009
        %v1011 = vpop.f32.mrf.mxu0
        %v1012 = vadd.f32 %v728, %v1011
        %1013 = vmatmul.bf16.gmra.mxu0 %v914
        %v1014 = vpop.f32.mrf.mxu0
        %v1015 = vadd.f32 %v733, %v1014
        %v1016 = vpop.f32.mrf.mxu0
        %v1017 = vadd.f32 %v738, %v1016
        %1018 = vmatmul.bf16.gmra.mxu0 %v916
        %v1019 = vpop.f32.mrf.mxu0
        %v1020 = vadd.f32 %v743, %v1019
        %v1021 = vpop.f32.mrf.mxu0
        %v1022 = vadd.f32 %v748, %v1021
        %1023 = vmatmul.bf16.gmra.mxu0 %v918
        %v1024 = vpop.f32.mrf.mxu0
        %v1025 = vadd.f32 %v753, %v1024
        %v1026 = vpop.f32.mrf.mxu0
        %v1027 = vadd.f32 %v758, %v1026
        %1028 = vmatmul.bf16.gmra.mxu0 %v920
        %v1029 = vpop.f32.mrf.mxu0
        %v1030 = vadd.f32 %v763, %v1029
        %v1031 = vpop.f32.mrf.mxu0
        %v1032 = vadd.f32 %v768, %v1031
        %1033 = vmatmul.bf16.gmra.mxu0 %v922
        %v1034 = vpop.f32.mrf.mxu0
        %v1035 = vadd.f32 %v773, %v1034
        %v1036 = vpop.f32.mrf.mxu0
        %v1037 = vadd.f32 %v778, %v1036
        %1038 = vmatmul.bf16.gmra.mxu0 %v924
        %v1039 = vpop.f32.mrf.mxu0
        %v1040 = vadd.f32 %v783, %v1039
        %v1041 = vpop.f32.mrf.mxu0
        %v1042 = vadd.f32 %v788, %v1041
        %1043 = vmatmul.bf16.gmra.mxu0 %v926
        %v1044 = vpop.f32.mrf.mxu0
        %v1045 = vadd.f32 %v793, %v1044
        %v1046 = vpop.f32.mrf.mxu0
        %v1047 = vadd.f32 %v798, %v1046
        %1048 = vdwg.mxu0
        %1049 = vmatpush.bf16.msra.mxu0 %v572
        %1050 = vmatpush.bf16.msra.mxu0 %v568
        %1051 = vmatpush.bf16.msra.mxu0 %v564
        %1052 = vmatpush.bf16.msra.mxu0 %v560
        %1053 = vmatpush.bf16.msra.mxu0 %v556
        %1054 = vmatpush.bf16.msra.mxu0 %v552
        %1055 = vmatpush.bf16.msra.mxu0 %v548
        %1056 = vmatpush.bf16.msra.mxu0 %v544
        %1057 = vmatmul.bf16.gmra.mxu0 %v897
        %v1058 = vpop.f32.mrf.mxu0
        %v1059 = vadd.f32 %v970, %v1058
        %v1060 = vpop.f32.mrf.mxu0
        %v1061 = vadd.f32 %v972, %v1060
        %1062 = vmatmul.bf16.gmra.mxu0 %v899
        %v1063 = vpop.f32.mrf.mxu0
        %v1064 = vadd.f32 %v975, %v1063
        %v1065 = vpop.f32.mrf.mxu0
        %v1066 = vadd.f32 %v977, %v1065
        %1067 = vmatmul.bf16.gmra.mxu0 %v901
        %v1068 = vpop.f32.mrf.mxu0
        %v1069 = vadd.f32 %v980, %v1068
        %v1070 = vpop.f32.mrf.mxu0
        %v1071 = vadd.f32 %v982, %v1070
        %1072 = vmatmul.bf16.gmra.mxu0 %v903
        %v1073 = vpop.f32.mrf.mxu0
        %v1074 = vadd.f32 %v985, %v1073
        %v1075 = vpop.f32.mrf.mxu0
        %v1076 = vadd.f32 %v987, %v1075
        %1077 = vmatmul.bf16.gmra.mxu0 %v905
        %v1078 = vpop.f32.mrf.mxu0
        %v1079 = vadd.f32 %v990, %v1078
        %v1080 = vpop.f32.mrf.mxu0
        %v1081 = vadd.f32 %v992, %v1080
        %1082 = vmatmul.bf16.gmra.mxu0 %v907
        %v1083 = vpop.f32.mrf.mxu0
        %v1084 = vadd.f32 %v995, %v1083
        %v1085 = vpop.f32.mrf.mxu0
        %v1086 = vadd.f32 %v997, %v1085
        %1087 = vmatmul.bf16.gmra.mxu0 %v909
        %v1088 = vpop.f32.mrf.mxu0
        %v1089 = vadd.f32 %v1000, %v1088
        %v1090 = vpop.f32.mrf.mxu0
        %v1091 = vadd.f32 %v1002, %v1090
        %1092 = vmatmul.bf16.gmra.mxu0 %v911
        %v1093 = vpop.f32.mrf.mxu0
        %v1094 = vadd.f32 %v1005, %v1093
        %v1095 = vpop.f32.mrf.mxu0
        %v1096 = vadd.f32 %v1007, %v1095
        %1097 = vmatmul.bf16.gmra.mxu0 %v913
        %v1098 = vpop.f32.mrf.mxu0
        %v1099 = vadd.f32 %v1010, %v1098
        %v1100 = vpop.f32.mrf.mxu0
        %v1101 = vadd.f32 %v1012, %v1100
        %1102 = vmatmul.bf16.gmra.mxu0 %v915
        %v1103 = vpop.f32.mrf.mxu0
        %v1104 = vadd.f32 %v1015, %v1103
        %v1105 = vpop.f32.mrf.mxu0
        %v1106 = vadd.f32 %v1017, %v1105
        %1107 = vmatmul.bf16.gmra.mxu0 %v917
        %v1108 = vpop.f32.mrf.mxu0
        %v1109 = vadd.f32 %v1020, %v1108
        %v1110 = vpop.f32.mrf.mxu0
        %v1111 = vadd.f32 %v1022, %v1110
        %1112 = vmatmul.bf16.gmra.mxu0 %v919
        %v1113 = vpop.f32.mrf.mxu0
        %v1114 = vadd.f32 %v1025, %v1113
        %v1115 = vpop.f32.mrf.mxu0
        %v1116 = vadd.f32 %v1027, %v1115
        %1117 = vmatmul.bf16.gmra.mxu0 %v921
        %v1118 = vpop.f32.mrf.mxu0
        %v1119 = vadd.f32 %v1030, %v1118
        %v1120 = vpop.f32.mrf.mxu0
        %v1121 = vadd.f32 %v1032, %v1120
        %1122 = vmatmul.bf16.gmra.mxu0 %v923
        %v1123 = vpop.f32.mrf.mxu0
        %v1124 = vadd.f32 %v1035, %v1123
        %v1125 = vpop.f32.mrf.mxu0
        %v1126 = vadd.f32 %v1037, %v1125
        %1127 = vmatmul.bf16.gmra.mxu0 %v925
        %v1128 = vpop.f32.mrf.mxu0
        %v1129 = vadd.f32 %v1040, %v1128
        %v1130 = vpop.f32.mrf.mxu0
        %v1131 = vadd.f32 %v1042, %v1130
        %1132 = vmatmul.bf16.gmra.mxu0 %v927
        %v1133 = vpop.f32.mrf.mxu0
        %v1134 = vadd.f32 %v1045, %v1133
        %v1135 = vpop.f32.mrf.mxu0
        %v1136 = vadd.f32 %v1047, %v1135
        %1137 = vdwg.mxu0
        %1138 = vmatpush.bf16.msra.mxu0 %v541
        %1139 = vmatpush.bf16.msra.mxu0 %v537
        %1140 = vmatpush.bf16.msra.mxu0 %v533
        %1141 = vmatpush.bf16.msra.mxu0 %v529
        %1142 = vmatpush.bf16.msra.mxu0 %v525
        %1143 = vmatpush.bf16.msra.mxu0 %v521
        %1144 = vmatpush.bf16.msra.mxu0 %v517
        %1145 = vmatpush.bf16.msra.mxu0 %v513
        %1146 = vmatmul.bf16.gmra.mxu0 %v896
        %v1147 = vpop.f32.mrf.mxu0
        %v1148 = vadd.f32 %v643, %v1147
        %v1149 = vpop.f32.mrf.mxu0
        %v1150 = vadd.f32 %v648, %v1149
        %1151 = vmatmul.bf16.gmra.mxu0 %v898
        %v1152 = vpop.f32.mrf.mxu0
        %v1153 = vadd.f32 %v653, %v1152
        %v1154 = vpop.f32.mrf.mxu0
        %v1155 = vadd.f32 %v658, %v1154
        %1156 = vmatmul.bf16.gmra.mxu0 %v900
        %v1157 = vpop.f32.mrf.mxu0
        %v1158 = vadd.f32 %v663, %v1157
        %v1159 = vpop.f32.mrf.mxu0
        %v1160 = vadd.f32 %v668, %v1159
        %1161 = vmatmul.bf16.gmra.mxu0 %v902
        %v1162 = vpop.f32.mrf.mxu0
        %v1163 = vadd.f32 %v673, %v1162
        %v1164 = vpop.f32.mrf.mxu0
        %v1165 = vadd.f32 %v678, %v1164
        %1166 = vmatmul.bf16.gmra.mxu0 %v904
        %v1167 = vpop.f32.mrf.mxu0
        %v1168 = vadd.f32 %v683, %v1167
        %v1169 = vpop.f32.mrf.mxu0
        %v1170 = vadd.f32 %v688, %v1169
        %1171 = vmatmul.bf16.gmra.mxu0 %v906
        %v1172 = vpop.f32.mrf.mxu0
        %v1173 = vadd.f32 %v693, %v1172
        %v1174 = vpop.f32.mrf.mxu0
        %v1175 = vadd.f32 %v698, %v1174
        %1176 = vmatmul.bf16.gmra.mxu0 %v908
        %v1177 = vpop.f32.mrf.mxu0
        %v1178 = vadd.f32 %v703, %v1177
        %v1179 = vpop.f32.mrf.mxu0
        %v1180 = vadd.f32 %v708, %v1179
        %1181 = vmatmul.bf16.gmra.mxu0 %v910
        %v1182 = vpop.f32.mrf.mxu0
        %v1183 = vadd.f32 %v713, %v1182
        %v1184 = vpop.f32.mrf.mxu0
        %v1185 = vadd.f32 %v718, %v1184
        %1186 = vmatmul.bf16.gmra.mxu0 %v912
        %v1187 = vpop.f32.mrf.mxu0
        %v1188 = vadd.f32 %v723, %v1187
        %v1189 = vpop.f32.mrf.mxu0
        %v1190 = vadd.f32 %v728, %v1189
        %1191 = vmatmul.bf16.gmra.mxu0 %v914
        %v1192 = vpop.f32.mrf.mxu0
        %v1193 = vadd.f32 %v733, %v1192
        %v1194 = vpop.f32.mrf.mxu0
        %v1195 = vadd.f32 %v738, %v1194
        %1196 = vmatmul.bf16.gmra.mxu0 %v916
        %v1197 = vpop.f32.mrf.mxu0
        %v1198 = vadd.f32 %v743, %v1197
        %v1199 = vpop.f32.mrf.mxu0
        %v1200 = vadd.f32 %v748, %v1199
        %1201 = vmatmul.bf16.gmra.mxu0 %v918
        %v1202 = vpop.f32.mrf.mxu0
        %v1203 = vadd.f32 %v753, %v1202
        %v1204 = vpop.f32.mrf.mxu0
        %v1205 = vadd.f32 %v758, %v1204
        %1206 = vmatmul.bf16.gmra.mxu0 %v920
        %v1207 = vpop.f32.mrf.mxu0
        %v1208 = vadd.f32 %v763, %v1207
        %v1209 = vpop.f32.mrf.mxu0
        %v1210 = vadd.f32 %v768, %v1209
        %1211 = vmatmul.bf16.gmra.mxu0 %v922
        %v1212 = vpop.f32.mrf.mxu0
        %v1213 = vadd.f32 %v773, %v1212
        %v1214 = vpop.f32.mrf.mxu0
        %v1215 = vadd.f32 %v778, %v1214
        %1216 = vmatmul.bf16.gmra.mxu0 %v924
        %v1217 = vpop.f32.mrf.mxu0
        %v1218 = vadd.f32 %v783, %v1217
        %v1219 = vpop.f32.mrf.mxu0
        %v1220 = vadd.f32 %v788, %v1219
        %1221 = vmatmul.bf16.gmra.mxu0 %v926
        %v1222 = vpop.f32.mrf.mxu0
        %v1223 = vadd.f32 %v793, %v1222
        %v1224 = vpop.f32.mrf.mxu0
        %v1225 = vadd.f32 %v798, %v1224
        %1226 = vdwg.mxu0
        %1227 = vmatpush.bf16.msra.mxu0 %v573
        %1228 = vmatpush.bf16.msra.mxu0 %v569
        %1229 = vmatpush.bf16.msra.mxu0 %v565
        %1230 = vmatpush.bf16.msra.mxu0 %v561
        %1231 = vmatpush.bf16.msra.mxu0 %v557
        %1232 = vmatpush.bf16.msra.mxu0 %v553
        %1233 = vmatpush.bf16.msra.mxu0 %v549
        %1234 = vmatpush.bf16.msra.mxu0 %v545
        %1235 = vmatmul.bf16.gmra.mxu0 %v897
        %v1236 = vpop.f32.mrf.mxu0
        %v1237 = vadd.f32 %v1148, %v1236
        %v1238 = vpop.f32.mrf.mxu0
        %v1239 = vadd.f32 %v1150, %v1238
        %1240 = vmatmul.bf16.gmra.mxu0 %v899
        %v1241 = vpop.f32.mrf.mxu0
        %v1242 = vadd.f32 %v1153, %v1241
        %v1243 = vpop.f32.mrf.mxu0
        %v1244 = vadd.f32 %v1155, %v1243
        %1245 = vmatmul.bf16.gmra.mxu0 %v901
        %v1246 = vpop.f32.mrf.mxu0
        %v1247 = vadd.f32 %v1158, %v1246
        %v1248 = vpop.f32.mrf.mxu0
        %v1249 = vadd.f32 %v1160, %v1248
        %1250 = vmatmul.bf16.gmra.mxu0 %v903
        %v1251 = vpop.f32.mrf.mxu0
        %v1252 = vadd.f32 %v1163, %v1251
        %v1253 = vpop.f32.mrf.mxu0
        %v1254 = vadd.f32 %v1165, %v1253
        %1255 = vmatmul.bf16.gmra.mxu0 %v905
        %v1256 = vpop.f32.mrf.mxu0
        %v1257 = vadd.f32 %v1168, %v1256
        %v1258 = vpop.f32.mrf.mxu0
        %v1259 = vadd.f32 %v1170, %v1258
        %1260 = vmatmul.bf16.gmra.mxu0 %v907
        %v1261 = vpop.f32.mrf.mxu0
        %v1262 = vadd.f32 %v1173, %v1261
        %v1263 = vpop.f32.mrf.mxu0
        %v1264 = vadd.f32 %v1175, %v1263
        %1265 = vmatmul.bf16.gmra.mxu0 %v909
        %v1266 = vpop.f32.mrf.mxu0
        %v1267 = vadd.f32 %v1178, %v1266
        %v1268 = vpop.f32.mrf.mxu0
        %v1269 = vadd.f32 %v1180, %v1268
        %1270 = vmatmul.bf16.gmra.mxu0 %v911
        %v1271 = vpop.f32.mrf.mxu0
        %v1272 = vadd.f32 %v1183, %v1271
        %v1273 = vpop.f32.mrf.mxu0
        %v1274 = vadd.f32 %v1185, %v1273
        %1275 = vmatmul.bf16.gmra.mxu0 %v913
        %v1276 = vpop.f32.mrf.mxu0
        %v1277 = vadd.f32 %v1188, %v1276
        %v1278 = vpop.f32.mrf.mxu0
        %v1279 = vadd.f32 %v1190, %v1278
        %1280 = vmatmul.bf16.gmra.mxu0 %v915
        %v1281 = vpop.f32.mrf.mxu0
        %v1282 = vadd.f32 %v1193, %v1281
        %v1283 = vpop.f32.mrf.mxu0
        %v1284 = vadd.f32 %v1195, %v1283
        %1285 = vmatmul.bf16.gmra.mxu0 %v917
        %v1286 = vpop.f32.mrf.mxu0
        %v1287 = vadd.f32 %v1198, %v1286
        %v1288 = vpop.f32.mrf.mxu0
        %v1289 = vadd.f32 %v1200, %v1288
        %1290 = vmatmul.bf16.gmra.mxu0 %v919
        %v1291 = vpop.f32.mrf.mxu0
        %v1292 = vadd.f32 %v1203, %v1291
        %v1293 = vpop.f32.mrf.mxu0
        %v1294 = vadd.f32 %v1205, %v1293
        %1295 = vmatmul.bf16.gmra.mxu0 %v921
        %v1296 = vpop.f32.mrf.mxu0
        %v1297 = vadd.f32 %v1208, %v1296
        %v1298 = vpop.f32.mrf.mxu0
        %v1299 = vadd.f32 %v1210, %v1298
        %1300 = vmatmul.bf16.gmra.mxu0 %v923
        %v1301 = vpop.f32.mrf.mxu0
        %v1302 = vadd.f32 %v1213, %v1301
        %v1303 = vpop.f32.mrf.mxu0
        %v1304 = vadd.f32 %v1215, %v1303
        %1305 = vmatmul.bf16.gmra.mxu0 %v925
        %v1306 = vpop.f32.mrf.mxu0
        %v1307 = vadd.f32 %v1218, %v1306
        %v1308 = vpop.f32.mrf.mxu0
        %v1309 = vadd.f32 %v1220, %v1308
        %1310 = vmatmul.bf16.gmra.mxu0 %v927
        %v1311 = vpop.f32.mrf.mxu0
        %v1312 = vadd.f32 %v1223, %v1311
        %v1313 = vpop.f32.mrf.mxu0
        %v1314 = vadd.f32 %v1225, %v1313
        %1315 = vdwg.mxu0
        %1316 = vmatpush.bf16.msra.mxu0 %v542
        %1317 = vmatpush.bf16.msra.mxu0 %v538
        %1318 = vmatpush.bf16.msra.mxu0 %v534
        %1319 = vmatpush.bf16.msra.mxu0 %v530
        %1320 = vmatpush.bf16.msra.mxu0 %v526
        %1321 = vmatpush.bf16.msra.mxu0 %v522
        %1322 = vmatpush.bf16.msra.mxu0 %v518
        %1323 = vmatpush.bf16.msra.mxu0 %v514
        %1324 = vmatmul.bf16.gmra.mxu0 %v896
        %v1325 = vpop.f32.mrf.mxu0
        %v1326 = vadd.f32 %v643, %v1325
        %v1327 = vpop.f32.mrf.mxu0
        %v1328 = vadd.f32 %v648, %v1327
        %1329 = vmatmul.bf16.gmra.mxu0 %v898
        %v1330 = vpop.f32.mrf.mxu0
        %v1331 = vadd.f32 %v653, %v1330
        %v1332 = vpop.f32.mrf.mxu0
        %v1333 = vadd.f32 %v658, %v1332
        %1334 = vmatmul.bf16.gmra.mxu0 %v900
        %v1335 = vpop.f32.mrf.mxu0
        %v1336 = vadd.f32 %v663, %v1335
        %v1337 = vpop.f32.mrf.mxu0
        %v1338 = vadd.f32 %v668, %v1337
        %1339 = vmatmul.bf16.gmra.mxu0 %v902
        %v1340 = vpop.f32.mrf.mxu0
        %v1341 = vadd.f32 %v673, %v1340
        %v1342 = vpop.f32.mrf.mxu0
        %v1343 = vadd.f32 %v678, %v1342
        %1344 = vmatmul.bf16.gmra.mxu0 %v904
        %v1345 = vpop.f32.mrf.mxu0
        %v1346 = vadd.f32 %v683, %v1345
        %v1347 = vpop.f32.mrf.mxu0
        %v1348 = vadd.f32 %v688, %v1347
        %1349 = vmatmul.bf16.gmra.mxu0 %v906
        %v1350 = vpop.f32.mrf.mxu0
        %v1351 = vadd.f32 %v693, %v1350
        %v1352 = vpop.f32.mrf.mxu0
        %v1353 = vadd.f32 %v698, %v1352
        %1354 = vmatmul.bf16.gmra.mxu0 %v908
        %v1355 = vpop.f32.mrf.mxu0
        %v1356 = vadd.f32 %v703, %v1355
        %v1357 = vpop.f32.mrf.mxu0
        %v1358 = vadd.f32 %v708, %v1357
        %1359 = vmatmul.bf16.gmra.mxu0 %v910
        %v1360 = vpop.f32.mrf.mxu0
        %v1361 = vadd.f32 %v713, %v1360
        %v1362 = vpop.f32.mrf.mxu0
        %v1363 = vadd.f32 %v718, %v1362
        %1364 = vmatmul.bf16.gmra.mxu0 %v912
        %v1365 = vpop.f32.mrf.mxu0
        %v1366 = vadd.f32 %v723, %v1365
        %v1367 = vpop.f32.mrf.mxu0
        %v1368 = vadd.f32 %v728, %v1367
        %1369 = vmatmul.bf16.gmra.mxu0 %v914
        %v1370 = vpop.f32.mrf.mxu0
        %v1371 = vadd.f32 %v733, %v1370
        %v1372 = vpop.f32.mrf.mxu0
        %v1373 = vadd.f32 %v738, %v1372
        %1374 = vmatmul.bf16.gmra.mxu0 %v916
        %v1375 = vpop.f32.mrf.mxu0
        %v1376 = vadd.f32 %v743, %v1375
        %v1377 = vpop.f32.mrf.mxu0
        %v1378 = vadd.f32 %v748, %v1377
        %1379 = vmatmul.bf16.gmra.mxu0 %v918
        %v1380 = vpop.f32.mrf.mxu0
        %v1381 = vadd.f32 %v753, %v1380
        %v1382 = vpop.f32.mrf.mxu0
        %v1383 = vadd.f32 %v758, %v1382
        %1384 = vmatmul.bf16.gmra.mxu0 %v920
        %v1385 = vpop.f32.mrf.mxu0
        %v1386 = vadd.f32 %v763, %v1385
        %v1387 = vpop.f32.mrf.mxu0
        %v1388 = vadd.f32 %v768, %v1387
        %1389 = vmatmul.bf16.gmra.mxu0 %v922
        %v1390 = vpop.f32.mrf.mxu0
        %v1391 = vadd.f32 %v773, %v1390
        %v1392 = vpop.f32.mrf.mxu0
        %v1393 = vadd.f32 %v778, %v1392
        %1394 = vmatmul.bf16.gmra.mxu0 %v924
        %v1395 = vpop.f32.mrf.mxu0
        %v1396 = vadd.f32 %v783, %v1395
        %v1397 = vpop.f32.mrf.mxu0
        %v1398 = vadd.f32 %v788, %v1397
        %1399 = vmatmul.bf16.gmra.mxu0 %v926
        %v1400 = vpop.f32.mrf.mxu0
        %v1401 = vadd.f32 %v793, %v1400
        %v1402 = vpop.f32.mrf.mxu0
        %v1403 = vadd.f32 %v798, %v1402
        %1404 = vdwg.mxu0
        %1405 = vmatpush.bf16.msra.mxu0 %v574
        %1406 = vmatpush.bf16.msra.mxu0 %v570
        %1407 = vmatpush.bf16.msra.mxu0 %v566
        %1408 = vmatpush.bf16.msra.mxu0 %v562
        %1409 = vmatpush.bf16.msra.mxu0 %v558
        %1410 = vmatpush.bf16.msra.mxu0 %v554
        %1411 = vmatpush.bf16.msra.mxu0 %v550
        %1412 = vmatpush.bf16.msra.mxu0 %v546
        %1413 = vmatmul.bf16.gmra.mxu0 %v897
        %v1414 = vpop.f32.mrf.mxu0
        %v1415 = vadd.f32 %v1326, %v1414
        %v1416 = vpop.f32.mrf.mxu0
        %v1417 = vadd.f32 %v1328, %v1416
        %1418 = vmatmul.bf16.gmra.mxu0 %v899
        %v1419 = vpop.f32.mrf.mxu0
        %v1420 = vadd.f32 %v1331, %v1419
        %v1421 = vpop.f32.mrf.mxu0
        %v1422 = vadd.f32 %v1333, %v1421
        %1423 = vmatmul.bf16.gmra.mxu0 %v901
        %v1424 = vpop.f32.mrf.mxu0
        %v1425 = vadd.f32 %v1336, %v1424
        %v1426 = vpop.f32.mrf.mxu0
        %v1427 = vadd.f32 %v1338, %v1426
        %1428 = vmatmul.bf16.gmra.mxu0 %v903
        %v1429 = vpop.f32.mrf.mxu0
        %v1430 = vadd.f32 %v1341, %v1429
        %v1431 = vpop.f32.mrf.mxu0
        %v1432 = vadd.f32 %v1343, %v1431
        %1433 = vmatmul.bf16.gmra.mxu0 %v905
        %v1434 = vpop.f32.mrf.mxu0
        %v1435 = vadd.f32 %v1346, %v1434
        %v1436 = vpop.f32.mrf.mxu0
        %v1437 = vadd.f32 %v1348, %v1436
        %1438 = vmatmul.bf16.gmra.mxu0 %v907
        %v1439 = vpop.f32.mrf.mxu0
        %v1440 = vadd.f32 %v1351, %v1439
        %v1441 = vpop.f32.mrf.mxu0
        %v1442 = vadd.f32 %v1353, %v1441
        %1443 = vmatmul.bf16.gmra.mxu0 %v909
        %v1444 = vpop.f32.mrf.mxu0
        %v1445 = vadd.f32 %v1356, %v1444
        %v1446 = vpop.f32.mrf.mxu0
        %v1447 = vadd.f32 %v1358, %v1446
        %1448 = vmatmul.bf16.gmra.mxu0 %v911
        %v1449 = vpop.f32.mrf.mxu0
        %v1450 = vadd.f32 %v1361, %v1449
        %v1451 = vpop.f32.mrf.mxu0
        %v1452 = vadd.f32 %v1363, %v1451
        %1453 = vmatmul.bf16.gmra.mxu0 %v913
        %v1454 = vpop.f32.mrf.mxu0
        %v1455 = vadd.f32 %v1366, %v1454
        %v1456 = vpop.f32.mrf.mxu0
        %v1457 = vadd.f32 %v1368, %v1456
        %1458 = vmatmul.bf16.gmra.mxu0 %v915
        %v1459 = vpop.f32.mrf.mxu0
        %v1460 = vadd.f32 %v1371, %v1459
        %v1461 = vpop.f32.mrf.mxu0
        %v1462 = vadd.f32 %v1373, %v1461
        %1463 = vmatmul.bf16.gmra.mxu0 %v917
        %v1464 = vpop.f32.mrf.mxu0
        %v1465 = vadd.f32 %v1376, %v1464
        %v1466 = vpop.f32.mrf.mxu0
        %v1467 = vadd.f32 %v1378, %v1466
        %1468 = vmatmul.bf16.gmra.mxu0 %v919
        %v1469 = vpop.f32.mrf.mxu0
        %v1470 = vadd.f32 %v1381, %v1469
        %v1471 = vpop.f32.mrf.mxu0
        %v1472 = vadd.f32 %v1383, %v1471
        %1473 = vmatmul.bf16.gmra.mxu0 %v921
        %v1474 = vpop.f32.mrf.mxu0
        %v1475 = vadd.f32 %v1386, %v1474
        %v1476 = vpop.f32.mrf.mxu0
        %v1477 = vadd.f32 %v1388, %v1476
        %1478 = vmatmul.bf16.gmra.mxu0 %v923
        %v1479 = vpop.f32.mrf.mxu0
        %v1480 = vadd.f32 %v1391, %v1479
        %v1481 = vpop.f32.mrf.mxu0
        %v1482 = vadd.f32 %v1393, %v1481
        %1483 = vmatmul.bf16.gmra.mxu0 %v925
        %v1484 = vpop.f32.mrf.mxu0
        %v1485 = vadd.f32 %v1396, %v1484
        %v1486 = vpop.f32.mrf.mxu0
        %v1487 = vadd.f32 %v1398, %v1486
        %1488 = vmatmul.bf16.gmra.mxu0 %v927
        %v1489 = vpop.f32.mrf.mxu0
        %v1490 = vadd.f32 %v1401, %v1489
        %v1491 = vpop.f32.mrf.mxu0
        %v1492 = vadd.f32 %v1403, %v1491
        %1493 = vdwg.mxu0
        %1494 = vmatpush.bf16.msra.mxu0 %v543
        %1495 = vmatpush.bf16.msra.mxu0 %v539
        %1496 = vmatpush.bf16.msra.mxu0 %v535
        %1497 = vmatpush.bf16.msra.mxu0 %v531
        %1498 = vmatpush.bf16.msra.mxu0 %v527
        %1499 = vmatpush.bf16.msra.mxu0 %v523
        %1500 = vmatpush.bf16.msra.mxu0 %v519
        %1501 = vmatpush.bf16.msra.mxu0 %v515
        %1502 = vmatmul.bf16.gmra.mxu0 %v896
        %v1503 = vpop.f32.mrf.mxu0
        %v1504 = vadd.f32 %v643, %v1503
        %v1505 = vpop.f32.mrf.mxu0
        %v1506 = vadd.f32 %v648, %v1505
        %1507 = vmatmul.bf16.gmra.mxu0 %v898
        %v1508 = vpop.f32.mrf.mxu0
        %v1509 = vadd.f32 %v653, %v1508
        %v1510 = vpop.f32.mrf.mxu0
        %v1511 = vadd.f32 %v658, %v1510
        %1512 = vmatmul.bf16.gmra.mxu0 %v900
        %v1513 = vpop.f32.mrf.mxu0
        %v1514 = vadd.f32 %v663, %v1513
        %v1515 = vpop.f32.mrf.mxu0
        %v1516 = vadd.f32 %v668, %v1515
        %1517 = vmatmul.bf16.gmra.mxu0 %v902
        %v1518 = vpop.f32.mrf.mxu0
        %v1519 = vadd.f32 %v673, %v1518
        %v1520 = vpop.f32.mrf.mxu0
        %v1521 = vadd.f32 %v678, %v1520
        %1522 = vmatmul.bf16.gmra.mxu0 %v904
        %v1523 = vpop.f32.mrf.mxu0
        %v1524 = vadd.f32 %v683, %v1523
        %v1525 = vpop.f32.mrf.mxu0
        %v1526 = vadd.f32 %v688, %v1525
        %1527 = vmatmul.bf16.gmra.mxu0 %v906
        %v1528 = vpop.f32.mrf.mxu0
        %v1529 = vadd.f32 %v693, %v1528
        %v1530 = vpop.f32.mrf.mxu0
        %v1531 = vadd.f32 %v698, %v1530
        %1532 = vmatmul.bf16.gmra.mxu0 %v908
        %v1533 = vpop.f32.mrf.mxu0
        %v1534 = vadd.f32 %v703, %v1533
        %v1535 = vpop.f32.mrf.mxu0
        %v1536 = vadd.f32 %v708, %v1535
        %1537 = vmatmul.bf16.gmra.mxu0 %v910
        %v1538 = vpop.f32.mrf.mxu0
        %v1539 = vadd.f32 %v713, %v1538
        %v1540 = vpop.f32.mrf.mxu0
        %v1541 = vadd.f32 %v718, %v1540
        %1542 = vmatmul.bf16.gmra.mxu0 %v912
        %v1543 = vpop.f32.mrf.mxu0
        %v1544 = vadd.f32 %v723, %v1543
        %v1545 = vpop.f32.mrf.mxu0
        %v1546 = vadd.f32 %v728, %v1545
        %1547 = vmatmul.bf16.gmra.mxu0 %v914
        %v1548 = vpop.f32.mrf.mxu0
        %v1549 = vadd.f32 %v733, %v1548
        %v1550 = vpop.f32.mrf.mxu0
        %v1551 = vadd.f32 %v738, %v1550
        %1552 = vmatmul.bf16.gmra.mxu0 %v916
        %v1553 = vpop.f32.mrf.mxu0
        %v1554 = vadd.f32 %v743, %v1553
        %v1555 = vpop.f32.mrf.mxu0
        %v1556 = vadd.f32 %v748, %v1555
        %1557 = vmatmul.bf16.gmra.mxu0 %v918
        %v1558 = vpop.f32.mrf.mxu0
        %v1559 = vadd.f32 %v753, %v1558
        %v1560 = vpop.f32.mrf.mxu0
        %v1561 = vadd.f32 %v758, %v1560
        %1562 = vmatmul.bf16.gmra.mxu0 %v920
        %v1563 = vpop.f32.mrf.mxu0
        %v1564 = vadd.f32 %v763, %v1563
        %v1565 = vpop.f32.mrf.mxu0
        %v1566 = vadd.f32 %v768, %v1565
        %1567 = vmatmul.bf16.gmra.mxu0 %v922
        %v1568 = vpop.f32.mrf.mxu0
        %v1569 = vadd.f32 %v773, %v1568
        %v1570 = vpop.f32.mrf.mxu0
        %v1571 = vadd.f32 %v778, %v1570
        %1572 = vmatmul.bf16.gmra.mxu0 %v924
        %v1573 = vpop.f32.mrf.mxu0
        %v1574 = vadd.f32 %v783, %v1573
        %v1575 = vpop.f32.mrf.mxu0
        %v1576 = vadd.f32 %v788, %v1575
        %1577 = vmatmul.bf16.gmra.mxu0 %v926
        %v1578 = vpop.f32.mrf.mxu0
        %v1579 = vadd.f32 %v793, %v1578
        %v1580 = vpop.f32.mrf.mxu0
        %v1581 = vadd.f32 %v798, %v1580
        %1582 = vdwg.mxu0
        %1583 = vmatpush.bf16.msra.mxu0 %v575
        %1584 = vmatpush.bf16.msra.mxu0 %v571
        %1585 = vmatpush.bf16.msra.mxu0 %v567
        %1586 = vmatpush.bf16.msra.mxu0 %v563
        %1587 = vmatpush.bf16.msra.mxu0 %v559
        %1588 = vmatpush.bf16.msra.mxu0 %v555
        %1589 = vmatpush.bf16.msra.mxu0 %v551
        %1590 = vmatpush.bf16.msra.mxu0 %v547
        %1591 = vmatmul.bf16.gmra.mxu0 %v897
        %v1592 = vpop.f32.mrf.mxu0
        %v1593 = vadd.f32 %v1504, %v1592
        %v1594 = vpop.f32.mrf.mxu0
        %v1595 = vadd.f32 %v1506, %v1594
        %1596 = vmatmul.bf16.gmra.mxu0 %v899
        %v1597 = vpop.f32.mrf.mxu0
        %v1598 = vadd.f32 %v1509, %v1597
        %v1599 = vpop.f32.mrf.mxu0
        %v1600 = vadd.f32 %v1511, %v1599
        %1601 = vmatmul.bf16.gmra.mxu0 %v901
        %v1602 = vpop.f32.mrf.mxu0
        %v1603 = vadd.f32 %v1514, %v1602
        %v1604 = vpop.f32.mrf.mxu0
        %v1605 = vadd.f32 %v1516, %v1604
        %1606 = vmatmul.bf16.gmra.mxu0 %v903
        %v1607 = vpop.f32.mrf.mxu0
        %v1608 = vadd.f32 %v1519, %v1607
        %v1609 = vpop.f32.mrf.mxu0
        %v1610 = vadd.f32 %v1521, %v1609
        %1611 = vmatmul.bf16.gmra.mxu0 %v905
        %v1612 = vpop.f32.mrf.mxu0
        %v1613 = vadd.f32 %v1524, %v1612
        %v1614 = vpop.f32.mrf.mxu0
        %v1615 = vadd.f32 %v1526, %v1614
        %1616 = vmatmul.bf16.gmra.mxu0 %v907
        %v1617 = vpop.f32.mrf.mxu0
        %v1618 = vadd.f32 %v1529, %v1617
        %v1619 = vpop.f32.mrf.mxu0
        %v1620 = vadd.f32 %v1531, %v1619
        %1621 = vmatmul.bf16.gmra.mxu0 %v909
        %v1622 = vpop.f32.mrf.mxu0
        %v1623 = vadd.f32 %v1534, %v1622
        %v1624 = vpop.f32.mrf.mxu0
        %v1625 = vadd.f32 %v1536, %v1624
        %1626 = vmatmul.bf16.gmra.mxu0 %v911
        %v1627 = vpop.f32.mrf.mxu0
        %v1628 = vadd.f32 %v1539, %v1627
        %v1629 = vpop.f32.mrf.mxu0
        %v1630 = vadd.f32 %v1541, %v1629
        %1631 = vmatmul.bf16.gmra.mxu0 %v913
        %v1632 = vpop.f32.mrf.mxu0
        %v1633 = vadd.f32 %v1544, %v1632
        %v1634 = vpop.f32.mrf.mxu0
        %v1635 = vadd.f32 %v1546, %v1634
        %1636 = vmatmul.bf16.gmra.mxu0 %v915
        %v1637 = vpop.f32.mrf.mxu0
        %v1638 = vadd.f32 %v1549, %v1637
        %v1639 = vpop.f32.mrf.mxu0
        %v1640 = vadd.f32 %v1551, %v1639
        %1641 = vmatmul.bf16.gmra.mxu0 %v917
        %v1642 = vpop.f32.mrf.mxu0
        %v1643 = vadd.f32 %v1554, %v1642
        %v1644 = vpop.f32.mrf.mxu0
        %v1645 = vadd.f32 %v1556, %v1644
        %1646 = vmatmul.bf16.gmra.mxu0 %v919
        %v1647 = vpop.f32.mrf.mxu0
        %v1648 = vadd.f32 %v1559, %v1647
        %v1649 = vpop.f32.mrf.mxu0
        %v1650 = vadd.f32 %v1561, %v1649
        %1651 = vmatmul.bf16.gmra.mxu0 %v921
        %v1652 = vpop.f32.mrf.mxu0
        %v1653 = vadd.f32 %v1564, %v1652
        %v1654 = vpop.f32.mrf.mxu0
        %v1655 = vadd.f32 %v1566, %v1654
        %1656 = vmatmul.bf16.gmra.mxu0 %v923
        %v1657 = vpop.f32.mrf.mxu0
        %v1658 = vadd.f32 %v1569, %v1657
        %v1659 = vpop.f32.mrf.mxu0
        %v1660 = vadd.f32 %v1571, %v1659
        %1661 = vmatmul.bf16.gmra.mxu0 %v925
        %v1662 = vpop.f32.mrf.mxu0
        %v1663 = vadd.f32 %v1574, %v1662
        %v1664 = vpop.f32.mrf.mxu0
        %v1665 = vadd.f32 %v1576, %v1664
        %1666 = vmatmul.bf16.gmra.mxu0 %v927
        %v1667 = vpop.f32.mrf.mxu0
        %v1668 = vadd.f32 %v1579, %v1667
        %v1669 = vpop.f32.mrf.mxu0
        %v1670 = vadd.f32 %v1581, %v1669
        %1671 = vdwg.mxu0
        %v1672 = vmax.f32 %v1059, 0.0
        %v1673 = vmax.f32 %v1237, 0.0
        %v1674 = vmax.f32 %v1415, 0.0
        %v1675 = vmax.f32 %v1593, 0.0
        %v1676 = vmax.f32 %v1061, 0.0
        %v1677 = vmax.f32 %v1239, 0.0
        %v1678 = vmax.f32 %v1417, 0.0
        %v1679 = vmax.f32 %v1595, 0.0
        %v1680 = vmax.f32 %v1064, 0.0
        %v1681 = vmax.f32 %v1242, 0.0
        %v1682 = vmax.f32 %v1420, 0.0
        %v1683 = vmax.f32 %v1598, 0.0
        %v1684 = vmax.f32 %v1066, 0.0
        %v1685 = vmax.f32 %v1244, 0.0
        %v1686 = vmax.f32 %v1422, 0.0
        %v1687 = vmax.f32 %v1600, 0.0
        %v1688 = vmax.f32 %v1069, 0.0
        %v1689 = vmax.f32 %v1247, 0.0
        %v1690 = vmax.f32 %v1425, 0.0
        %v1691 = vmax.f32 %v1603, 0.0
        %v1692 = vmax.f32 %v1071, 0.0
        %v1693 = vmax.f32 %v1249, 0.0
        %v1694 = vmax.f32 %v1427, 0.0
        %v1695 = vmax.f32 %v1605, 0.0
        %v1696 = vmax.f32 %v1074, 0.0
        %v1697 = vmax.f32 %v1252, 0.0
        %v1698 = vmax.f32 %v1430, 0.0
        %v1699 = vmax.f32 %v1608, 0.0
        %v1700 = vmax.f32 %v1076, 0.0
        %v1701 = vmax.f32 %v1254, 0.0
        %v1702 = vmax.f32 %v1432, 0.0
        %v1703 = vmax.f32 %v1610, 0.0
        %v1704 = vmax.f32 %v1079, 0.0
        %v1705 = vmax.f32 %v1257, 0.0
        %v1706 = vmax.f32 %v1435, 0.0
        %v1707 = vmax.f32 %v1613, 0.0
        %v1708 = vmax.f32 %v1081, 0.0
        %v1709 = vmax.f32 %v1259, 0.0
        %v1710 = vmax.f32 %v1437, 0.0
        %v1711 = vmax.f32 %v1615, 0.0
        %v1712 = vmax.f32 %v1084, 0.0
        %v1713 = vmax.f32 %v1262, 0.0
        %v1714 = vmax.f32 %v1440, 0.0
        %v1715 = vmax.f32 %v1618, 0.0
        %v1716 = vmax.f32 %v1086, 0.0
        %v1717 = vmax.f32 %v1264, 0.0
        %v1718 = vmax.f32 %v1442, 0.0
        %v1719 = vmax.f32 %v1620, 0.0
        %v1720 = vmax.f32 %v1089, 0.0
        %v1721 = vmax.f32 %v1267, 0.0
        %v1722 = vmax.f32 %v1445, 0.0
        %v1723 = vmax.f32 %v1623, 0.0
        %v1724 = vmax.f32 %v1091, 0.0
        %v1725 = vmax.f32 %v1269, 0.0
        %v1726 = vmax.f32 %v1447, 0.0
        %v1727 = vmax.f32 %v1625, 0.0
        %v1728 = vmax.f32 %v1094, 0.0
        %v1729 = vmax.f32 %v1272, 0.0
        %v1730 = vmax.f32 %v1450, 0.0
        %v1731 = vmax.f32 %v1628, 0.0
        %v1732 = vmax.f32 %v1096, 0.0
        %v1733 = vmax.f32 %v1274, 0.0
        %v1734 = vmax.f32 %v1452, 0.0
        %v1735 = vmax.f32 %v1630, 0.0
        %v1736 = vmax.f32 %v1099, 0.0
        %v1737 = vmax.f32 %v1277, 0.0
        %v1738 = vmax.f32 %v1455, 0.0
        %v1739 = vmax.f32 %v1633, 0.0
        %v1740 = vmax.f32 %v1101, 0.0
        %v1741 = vmax.f32 %v1279, 0.0
        %v1742 = vmax.f32 %v1457, 0.0
        %v1743 = vmax.f32 %v1635, 0.0
        %v1744 = vmax.f32 %v1104, 0.0
        %v1745 = vmax.f32 %v1282, 0.0
        %v1746 = vmax.f32 %v1460, 0.0
        %v1747 = vmax.f32 %v1638, 0.0
        %v1748 = vmax.f32 %v1106, 0.0
        %v1749 = vmax.f32 %v1284, 0.0
        %v1750 = vmax.f32 %v1462, 0.0
        %v1751 = vmax.f32 %v1640, 0.0
        %v1752 = vmax.f32 %v1109, 0.0
        %v1753 = vmax.f32 %v1287, 0.0
        %v1754 = vmax.f32 %v1465, 0.0
        %v1755 = vmax.f32 %v1643, 0.0
        %v1756 = vmax.f32 %v1111, 0.0
        %v1757 = vmax.f32 %v1289, 0.0
        %v1758 = vmax.f32 %v1467, 0.0
        %v1759 = vmax.f32 %v1645, 0.0
        %v1760 = vmax.f32 %v1114, 0.0
        %v1761 = vmax.f32 %v1292, 0.0
        %v1762 = vmax.f32 %v1470, 0.0
        %v1763 = vmax.f32 %v1648, 0.0
        %v1764 = vmax.f32 %v1116, 0.0
        %v1765 = vmax.f32 %v1294, 0.0
        %v1766 = vmax.f32 %v1472, 0.0
        %v1767 = vmax.f32 %v1650, 0.0
        %v1768 = vmax.f32 %v1119, 0.0
        %v1769 = vmax.f32 %v1297, 0.0
        %v1770 = vmax.f32 %v1475, 0.0
        %v1771 = vmax.f32 %v1653, 0.0
        %v1772 = vmax.f32 %v1121, 0.0
        %v1773 = vmax.f32 %v1299, 0.0
        %v1774 = vmax.f32 %v1477, 0.0
        %v1775 = vmax.f32 %v1655, 0.0
        %v1776 = vmax.f32 %v1124, 0.0
        %v1777 = vmax.f32 %v1302, 0.0
        %v1778 = vmax.f32 %v1480, 0.0
        %v1779 = vmax.f32 %v1658, 0.0
        %v1780 = vmax.f32 %v1126, 0.0
        %v1781 = vmax.f32 %v1304, 0.0
        %v1782 = vmax.f32 %v1482, 0.0
        %v1783 = vmax.f32 %v1660, 0.0
        %v1784 = vmax.f32 %v1129, 0.0
        %v1785 = vmax.f32 %v1307, 0.0
        %v1786 = vmax.f32 %v1485, 0.0
        %v1787 = vmax.f32 %v1663, 0.0
        %v1788 = vmax.f32 %v1131, 0.0
        %v1789 = vmax.f32 %v1309, 0.0
        %v1790 = vmax.f32 %v1487, 0.0
        %v1791 = vmax.f32 %v1665, 0.0
        %v1792 = vmax.f32 %v1134, 0.0
        %v1793 = vmax.f32 %v1312, 0.0
        %v1794 = vmax.f32 %v1490, 0.0
        %v1795 = vmax.f32 %v1668, 0.0
        %v1796 = vmax.f32 %v1136, 0.0
        %v1797 = vmax.f32 %v1314, 0.0
        %v1798 = vmax.f32 %v1492, 0.0
        %v1799 = vmax.f32 %v1670, 0.0
        %v1800 = vpack.c.bf16 %v1676, %v1672
        %v1801 = vpack.c.bf16 %v1677, %v1673
        %v1802 = vpack.c.bf16 %v1678, %v1674
        %v1803 = vpack.c.bf16 %v1679, %v1675
        %v1804 = vpack.c.bf16 %v1684, %v1680
        %v1805 = vpack.c.bf16 %v1685, %v1681
        %v1806 = vpack.c.bf16 %v1686, %v1682
        %v1807 = vpack.c.bf16 %v1687, %v1683
        %v1808 = vpack.c.bf16 %v1692, %v1688
        %v1809 = vpack.c.bf16 %v1693, %v1689
        %v1810 = vpack.c.bf16 %v1694, %v1690
        %v1811 = vpack.c.bf16 %v1695, %v1691
        %v1812 = vpack.c.bf16 %v1700, %v1696
        %v1813 = vpack.c.bf16 %v1701, %v1697
        %v1814 = vpack.c.bf16 %v1702, %v1698
        %v1815 = vpack.c.bf16 %v1703, %v1699
        %v1816 = vpack.c.bf16 %v1708, %v1704
        %v1817 = vpack.c.bf16 %v1709, %v1705
        %v1818 = vpack.c.bf16 %v1710, %v1706
        %v1819 = vpack.c.bf16 %v1711, %v1707
        %v1820 = vpack.c.bf16 %v1716, %v1712
        %v1821 = vpack.c.bf16 %v1717, %v1713
        %v1822 = vpack.c.bf16 %v1718, %v1714
        %v1823 = vpack.c.bf16 %v1719, %v1715
        %v1824 = vpack.c.bf16 %v1724, %v1720
        %v1825 = vpack.c.bf16 %v1725, %v1721
        %v1826 = vpack.c.bf16 %v1726, %v1722
        %v1827 = vpack.c.bf16 %v1727, %v1723
        %v1828 = vpack.c.bf16 %v1732, %v1728
        %v1829 = vpack.c.bf16 %v1733, %v1729
        %v1830 = vpack.c.bf16 %v1734, %v1730
        %v1831 = vpack.c.bf16 %v1735, %v1731
        %v1832 = vpack.c.bf16 %v1740, %v1736
        %v1833 = vpack.c.bf16 %v1741, %v1737
        %v1834 = vpack.c.bf16 %v1742, %v1738
        %v1835 = vpack.c.bf16 %v1743, %v1739
        %v1836 = vpack.c.bf16 %v1748, %v1744
        %v1837 = vpack.c.bf16 %v1749, %v1745
        %v1838 = vpack.c.bf16 %v1750, %v1746
        %v1839 = vpack.c.bf16 %v1751, %v1747
        %v1840 = vpack.c.bf16 %v1756, %v1752
        %v1841 = vpack.c.bf16 %v1757, %v1753
        %v1842 = vpack.c.bf16 %v1758, %v1754
        %v1843 = vpack.c.bf16 %v1759, %v1755
        %v1844 = vpack.c.bf16 %v1764, %v1760
        %v1845 = vpack.c.bf16 %v1765, %v1761
        %v1846 = vpack.c.bf16 %v1766, %v1762
        %v1847 = vpack.c.bf16 %v1767, %v1763
        %v1848 = vpack.c.bf16 %v1772, %v1768
        %v1849 = vpack.c.bf16 %v1773, %v1769
        %v1850 = vpack.c.bf16 %v1774, %v1770
        %v1851 = vpack.c.bf16 %v1775, %v1771
        %v1852 = vpack.c.bf16 %v1780, %v1776
        %v1853 = vpack.c.bf16 %v1781, %v1777
        %v1854 = vpack.c.bf16 %v1782, %v1778
        %v1855 = vpack.c.bf16 %v1783, %v1779
        %v1856 = vpack.c.bf16 %v1788, %v1784
        %v1857 = vpack.c.bf16 %v1789, %v1785
        %v1858 = vpack.c.bf16 %v1790, %v1786
        %v1859 = vpack.c.bf16 %v1791, %v1787
        %v1860 = vpack.c.bf16 %v1796, %v1792
        %v1861 = vpack.c.bf16 %v1797, %v1793
        %v1862 = vpack.c.bf16 %v1798, %v1794
        %v1863 = vpack.c.bf16 %v1799, %v1795
        %v1864 = vld [vmem:[%s3] sm:$0xff]
        %v1865 = vld [vmem:[%s3 + $0x8] sm:$0xff]
        %v1866 = vld [vmem:[%s3 + $0x10] sm:$0xff]
        %v1867 = vld [vmem:[%s3 + $0x18] sm:$0xff]
        %v1868 = vld [vmem:[%s3 + $0x20] sm:$0xff]
        %v1869 = vld [vmem:[%s3 + $0x28] sm:$0xff]
        %v1870 = vld [vmem:[%s3 + $0x30] sm:$0xff]
        %v1871 = vld [vmem:[%s3 + $0x38] sm:$0xff]
        %v1872 = vld [vmem:[%s3 + $0x40] sm:$0xff]
        %v1873 = vld [vmem:[%s3 + $0x48] sm:$0xff]
        %v1874 = vld [vmem:[%s3 + $0x50] sm:$0xff]
        %v1875 = vld [vmem:[%s3 + $0x58] sm:$0xff]
        %v1876 = vld [vmem:[%s3 + $0x60] sm:$0xff]
        %v1877 = vld [vmem:[%s3 + $0x68] sm:$0xff]
        %v1878 = vld [vmem:[%s3 + $0x70] sm:$0xff]
        %v1879 = vld [vmem:[%s3 + $0x78] sm:$0xff]
        %v1880 = vld [vmem:[%s4] sm:$0xff]
        %v1881 = vld [vmem:[%s4 + $0x8] sm:$0xff]
        %v1882 = vld [vmem:[%s4 + $0x10] sm:$0xff]
        %v1883 = vld [vmem:[%s4 + $0x18] sm:$0xff]
        %v1884 = vld [vmem:[%s4 + $0x20] sm:$0xff]
        %v1885 = vld [vmem:[%s4 + $0x28] sm:$0xff]
        %v1886 = vld [vmem:[%s4 + $0x30] sm:$0xff]
        %v1887 = vld [vmem:[%s4 + $0x38] sm:$0xff]
        %v1888 = vld [vmem:[%s4 + $0x40] sm:$0xff]
        %v1889 = vld [vmem:[%s4 + $0x48] sm:$0xff]
        %v1890 = vld [vmem:[%s4 + $0x50] sm:$0xff]
        %v1891 = vld [vmem:[%s4 + $0x58] sm:$0xff]
        %v1892 = vld [vmem:[%s4 + $0x60] sm:$0xff]
        %v1893 = vld [vmem:[%s4 + $0x68] sm:$0xff]
        %v1894 = vld [vmem:[%s4 + $0x70] sm:$0xff]
        %v1895 = vld [vmem:[%s4 + $0x78] sm:$0xff]
        %1897 = vset.pattern.permute.xlu0 0
        %1898 = vperm.xlu0 %1897, %v1880
        %v1899 = vpop.permute.xlu0 %1898
        %1902 = vset.pattern.permute.xlu0 0
        %1903 = vperm.xlu0 %1902, %v1881
        %v1904 = vpop.permute.xlu0 %1903
        %1907 = vset.pattern.permute.xlu0 0
        %1908 = vperm.xlu0 %1907, %v1882
        %v1909 = vpop.permute.xlu0 %1908
        %1912 = vset.pattern.permute.xlu0 0
        %1913 = vperm.xlu0 %1912, %v1883
        %v1914 = vpop.permute.xlu0 %1913
        %1917 = vset.pattern.permute.xlu0 0
        %1918 = vperm.xlu0 %1917, %v1884
        %v1919 = vpop.permute.xlu0 %1918
        %1922 = vset.pattern.permute.xlu0 0
        %1923 = vperm.xlu0 %1922, %v1885
        %v1924 = vpop.permute.xlu0 %1923
        %1927 = vset.pattern.permute.xlu0 0
        %1928 = vperm.xlu0 %1927, %v1886
        %v1929 = vpop.permute.xlu0 %1928
        %1932 = vset.pattern.permute.xlu0 0
        %1933 = vperm.xlu0 %1932, %v1887
        %v1934 = vpop.permute.xlu0 %1933
        %1937 = vset.pattern.permute.xlu0 0
        %1938 = vperm.xlu0 %1937, %v1888
        %v1939 = vpop.permute.xlu0 %1938
        %1942 = vset.pattern.permute.xlu0 0
        %1943 = vperm.xlu0 %1942, %v1889
        %v1944 = vpop.permute.xlu0 %1943
        %1947 = vset.pattern.permute.xlu0 0
        %1948 = vperm.xlu0 %1947, %v1890
        %v1949 = vpop.permute.xlu0 %1948
        %1952 = vset.pattern.permute.xlu0 0
        %1953 = vperm.xlu0 %1952, %v1891
        %v1954 = vpop.permute.xlu0 %1953
        %1957 = vset.pattern.permute.xlu0 0
        %1958 = vperm.xlu0 %1957, %v1892
        %v1959 = vpop.permute.xlu0 %1958
        %1962 = vset.pattern.permute.xlu0 0
        %1963 = vperm.xlu0 %1962, %v1893
        %v1964 = vpop.permute.xlu0 %1963
        %1967 = vset.pattern.permute.xlu0 0
        %1968 = vperm.xlu0 %1967, %v1894
        %v1969 = vpop.permute.xlu0 %1968
        %1972 = vset.pattern.permute.xlu0 0
        %1973 = vperm.xlu0 %1972, %v1895
        %v1974 = vpop.permute.xlu0 %1973
        %v1992 = vunpack.c.l.b16 %v1864
        %v1993 = vunpack.c.h.b16 %v1864
        %v1994 = vunpack.c.l.b16 %v1865
        %v1995 = vunpack.c.h.b16 %v1865
        %v1996 = vunpack.c.l.b16 %v1866
        %v1997 = vunpack.c.h.b16 %v1866
        %v1998 = vunpack.c.l.b16 %v1867
        %v1999 = vunpack.c.h.b16 %v1867
        %v2000 = vunpack.c.l.b16 %v1868
        %v2001 = vunpack.c.h.b16 %v1868
        %v2002 = vunpack.c.l.b16 %v1869
        %v2003 = vunpack.c.h.b16 %v1869
        %v2004 = vunpack.c.l.b16 %v1870
        %v2005 = vunpack.c.h.b16 %v1870
        %v2006 = vunpack.c.l.b16 %v1871
        %v2007 = vunpack.c.h.b16 %v1871
        %v2008 = vunpack.c.l.b16 %v1872
        %v2009 = vunpack.c.h.b16 %v1872
        %v2010 = vunpack.c.l.b16 %v1873
        %v2011 = vunpack.c.h.b16 %v1873
        %v2012 = vunpack.c.l.b16 %v1874
        %v2013 = vunpack.c.h.b16 %v1874
        %v2014 = vunpack.c.l.b16 %v1875
        %v2015 = vunpack.c.h.b16 %v1875
        %v2016 = vunpack.c.l.b16 %v1876
        %v2017 = vunpack.c.h.b16 %v1876
        %v2018 = vunpack.c.l.b16 %v1877
        %v2019 = vunpack.c.h.b16 %v1877
        %v2020 = vunpack.c.l.b16 %v1878
        %v2021 = vunpack.c.h.b16 %v1878
        %v2022 = vunpack.c.l.b16 %v1879
        %v2023 = vunpack.c.h.b16 %v1879
        %v2024 = vpack.c.b16 %v1994, %v1992
        %v2025 = vpack.c.b16 %v1995, %v1993
        %v2026 = vpack.c.b16 %v1998, %v1996
        %v2027 = vpack.c.b16 %v1999, %v1997
        %v2028 = vpack.c.b16 %v2002, %v2000
        %v2029 = vpack.c.b16 %v2003, %v2001
        %v2030 = vpack.c.b16 %v2006, %v2004
        %v2031 = vpack.c.b16 %v2007, %v2005
        %v2032 = vpack.c.b16 %v2010, %v2008
        %v2033 = vpack.c.b16 %v2011, %v2009
        %v2034 = vpack.c.b16 %v2014, %v2012
        %v2035 = vpack.c.b16 %v2015, %v2013
        %v2036 = vpack.c.b16 %v2018, %v2016
        %v2037 = vpack.c.b16 %v2019, %v2017
        %v2038 = vpack.c.b16 %v2022, %v2020
        %v2039 = vpack.c.b16 %v2023, %v2021
        %2056 = vmatpush.bf16.msra.mxu0 %v1828
        %2057 = vmatpush.bf16.msra.mxu0 %v1824
        %2058 = vmatpush.bf16.msra.mxu0 %v1820
        %2059 = vmatpush.bf16.msra.mxu0 %v1816
        %2060 = vmatpush.bf16.msra.mxu0 %v1812
        %2061 = vmatpush.bf16.msra.mxu0 %v1808
        %2062 = vmatpush.bf16.msra.mxu0 %v1804
        %2063 = vmatpush.bf16.msra.mxu0 %v1800
        %2064 = vmatmul.bf16.gmra.mxu0 %v2024
        %v2065 = vpop.f32.mrf.mxu0
        %v2066 = vadd.f32 %v1899, %v2065
        %v2067 = vpop.f32.mrf.mxu0
        %v2068 = vadd.f32 %v1904, %v2067
        %2069 = vmatmul.bf16.gmra.mxu0 %v2026
        %v2070 = vpop.f32.mrf.mxu0
        %v2071 = vadd.f32 %v1909, %v2070
        %v2072 = vpop.f32.mrf.mxu0
        %v2073 = vadd.f32 %v1914, %v2072
        %2074 = vmatmul.bf16.gmra.mxu0 %v2028
        %v2075 = vpop.f32.mrf.mxu0
        %v2076 = vadd.f32 %v1919, %v2075
        %v2077 = vpop.f32.mrf.mxu0
        %v2078 = vadd.f32 %v1924, %v2077
        %2079 = vmatmul.bf16.gmra.mxu0 %v2030
        %v2080 = vpop.f32.mrf.mxu0
        %v2081 = vadd.f32 %v1929, %v2080
        %v2082 = vpop.f32.mrf.mxu0
        %v2083 = vadd.f32 %v1934, %v2082
        %2084 = vmatmul.bf16.gmra.mxu0 %v2032
        %v2085 = vpop.f32.mrf.mxu0
        %v2086 = vadd.f32 %v1939, %v2085
        %v2087 = vpop.f32.mrf.mxu0
        %v2088 = vadd.f32 %v1944, %v2087
        %2089 = vmatmul.bf16.gmra.mxu0 %v2034
        %v2090 = vpop.f32.mrf.mxu0
        %v2091 = vadd.f32 %v1949, %v2090
        %v2092 = vpop.f32.mrf.mxu0
        %v2093 = vadd.f32 %v1954, %v2092
        %2094 = vmatmul.bf16.gmra.mxu0 %v2036
        %v2095 = vpop.f32.mrf.mxu0
        %v2096 = vadd.f32 %v1959, %v2095
        %v2097 = vpop.f32.mrf.mxu0
        %v2098 = vadd.f32 %v1964, %v2097
        %2099 = vmatmul.bf16.gmra.mxu0 %v2038
        %v2100 = vpop.f32.mrf.mxu0
        %v2101 = vadd.f32 %v1969, %v2100
        %v2102 = vpop.f32.mrf.mxu0
        %v2103 = vadd.f32 %v1974, %v2102
        %2104 = vdwg.mxu0
        %2105 = vmatpush.bf16.msra.mxu0 %v1860
        %2106 = vmatpush.bf16.msra.mxu0 %v1856
        %2107 = vmatpush.bf16.msra.mxu0 %v1852
        %2108 = vmatpush.bf16.msra.mxu0 %v1848
        %2109 = vmatpush.bf16.msra.mxu0 %v1844
        %2110 = vmatpush.bf16.msra.mxu0 %v1840
        %2111 = vmatpush.bf16.msra.mxu0 %v1836
        %2112 = vmatpush.bf16.msra.mxu0 %v1832
        %2113 = vmatmul.bf16.gmra.mxu0 %v2025
        %v2114 = vpop.f32.mrf.mxu0
        %v2115 = vadd.f32 %v2066, %v2114
        %v2116 = vpop.f32.mrf.mxu0
        %v2117 = vadd.f32 %v2068, %v2116
        %2118 = vmatmul.bf16.gmra.mxu0 %v2027
        %v2119 = vpop.f32.mrf.mxu0
        %v2120 = vadd.f32 %v2071, %v2119
        %v2121 = vpop.f32.mrf.mxu0
        %v2122 = vadd.f32 %v2073, %v2121
        %2123 = vmatmul.bf16.gmra.mxu0 %v2029
        %v2124 = vpop.f32.mrf.mxu0
        %v2125 = vadd.f32 %v2076, %v2124
        %v2126 = vpop.f32.mrf.mxu0
        %v2127 = vadd.f32 %v2078, %v2126
        %2128 = vmatmul.bf16.gmra.mxu0 %v2031
        %v2129 = vpop.f32.mrf.mxu0
        %v2130 = vadd.f32 %v2081, %v2129
        %v2131 = vpop.f32.mrf.mxu0
        %v2132 = vadd.f32 %v2083, %v2131
        %2133 = vmatmul.bf16.gmra.mxu0 %v2033
        %v2134 = vpop.f32.mrf.mxu0
        %v2135 = vadd.f32 %v2086, %v2134
        %v2136 = vpop.f32.mrf.mxu0
        %v2137 = vadd.f32 %v2088, %v2136
        %2138 = vmatmul.bf16.gmra.mxu0 %v2035
        %v2139 = vpop.f32.mrf.mxu0
        %v2140 = vadd.f32 %v2091, %v2139
        %v2141 = vpop.f32.mrf.mxu0
        %v2142 = vadd.f32 %v2093, %v2141
        %2143 = vmatmul.bf16.gmra.mxu0 %v2037
        %v2144 = vpop.f32.mrf.mxu0
        %v2145 = vadd.f32 %v2096, %v2144
        %v2146 = vpop.f32.mrf.mxu0
        %v2147 = vadd.f32 %v2098, %v2146
        %2148 = vmatmul.bf16.gmra.mxu0 %v2039
        %v2149 = vpop.f32.mrf.mxu0
        %v2150 = vadd.f32 %v2101, %v2149
        %v2151 = vpop.f32.mrf.mxu0
        %v2152 = vadd.f32 %v2103, %v2151
        %2153 = vdwg.mxu0
        %2154 = vmatpush.bf16.msra.mxu0 %v1829
        %2155 = vmatpush.bf16.msra.mxu0 %v1825
        %2156 = vmatpush.bf16.msra.mxu0 %v1821
        %2157 = vmatpush.bf16.msra.mxu0 %v1817
        %2158 = vmatpush.bf16.msra.mxu0 %v1813
        %2159 = vmatpush.bf16.msra.mxu0 %v1809
        %2160 = vmatpush.bf16.msra.mxu0 %v1805
        %2161 = vmatpush.bf16.msra.mxu0 %v1801
        %2162 = vmatmul.bf16.gmra.mxu0 %v2024
        %v2163 = vpop.f32.mrf.mxu0
        %v2164 = vadd.f32 %v1899, %v2163
        %v2165 = vpop.f32.mrf.mxu0
        %v2166 = vadd.f32 %v1904, %v2165
        %2167 = vmatmul.bf16.gmra.mxu0 %v2026
        %v2168 = vpop.f32.mrf.mxu0
        %v2169 = vadd.f32 %v1909, %v2168
        %v2170 = vpop.f32.mrf.mxu0
        %v2171 = vadd.f32 %v1914, %v2170
        %2172 = vmatmul.bf16.gmra.mxu0 %v2028
        %v2173 = vpop.f32.mrf.mxu0
        %v2174 = vadd.f32 %v1919, %v2173
        %v2175 = vpop.f32.mrf.mxu0
        %v2176 = vadd.f32 %v1924, %v2175
        %2177 = vmatmul.bf16.gmra.mxu0 %v2030
        %v2178 = vpop.f32.mrf.mxu0
        %v2179 = vadd.f32 %v1929, %v2178
        %v2180 = vpop.f32.mrf.mxu0
        %v2181 = vadd.f32 %v1934, %v2180
        %2182 = vmatmul.bf16.gmra.mxu0 %v2032
        %v2183 = vpop.f32.mrf.mxu0
        %v2184 = vadd.f32 %v1939, %v2183
        %v2185 = vpop.f32.mrf.mxu0
        %v2186 = vadd.f32 %v1944, %v2185
        %2187 = vmatmul.bf16.gmra.mxu0 %v2034
        %v2188 = vpop.f32.mrf.mxu0
        %v2189 = vadd.f32 %v1949, %v2188
        %v2190 = vpop.f32.mrf.mxu0
        %v2191 = vadd.f32 %v1954, %v2190
        %2192 = vmatmul.bf16.gmra.mxu0 %v2036
        %v2193 = vpop.f32.mrf.mxu0
        %v2194 = vadd.f32 %v1959, %v2193
        %v2195 = vpop.f32.mrf.mxu0
        %v2196 = vadd.f32 %v1964, %v2195
        %2197 = vmatmul.bf16.gmra.mxu0 %v2038
        %v2198 = vpop.f32.mrf.mxu0
        %v2199 = vadd.f32 %v1969, %v2198
        %v2200 = vpop.f32.mrf.mxu0
        %v2201 = vadd.f32 %v1974, %v2200
        %2202 = vdwg.mxu0
        %2203 = vmatpush.bf16.msra.mxu0 %v1861
        %2204 = vmatpush.bf16.msra.mxu0 %v1857
        %2205 = vmatpush.bf16.msra.mxu0 %v1853
        %2206 = vmatpush.bf16.msra.mxu0 %v1849
        %2207 = vmatpush.bf16.msra.mxu0 %v1845
        %2208 = vmatpush.bf16.msra.mxu0 %v1841
        %2209 = vmatpush.bf16.msra.mxu0 %v1837
        %2210 = vmatpush.bf16.msra.mxu0 %v1833
        %2211 = vmatmul.bf16.gmra.mxu0 %v2025
        %v2212 = vpop.f32.mrf.mxu0
        %v2213 = vadd.f32 %v2164, %v2212
        %v2214 = vpop.f32.mrf.mxu0
        %v2215 = vadd.f32 %v2166, %v2214
        %2216 = vmatmul.bf16.gmra.mxu0 %v2027
        %v2217 = vpop.f32.mrf.mxu0
        %v2218 = vadd.f32 %v2169, %v2217
        %v2219 = vpop.f32.mrf.mxu0
        %v2220 = vadd.f32 %v2171, %v2219
        %2221 = vmatmul.bf16.gmra.mxu0 %v2029
        %v2222 = vpop.f32.mrf.mxu0
        %v2223 = vadd.f32 %v2174, %v2222
        %v2224 = vpop.f32.mrf.mxu0
        %v2225 = vadd.f32 %v2176, %v2224
        %2226 = vmatmul.bf16.gmra.mxu0 %v2031
        %v2227 = vpop.f32.mrf.mxu0
        %v2228 = vadd.f32 %v2179, %v2227
        %v2229 = vpop.f32.mrf.mxu0
        %v2230 = vadd.f32 %v2181, %v2229
        %2231 = vmatmul.bf16.gmra.mxu0 %v2033
        %v2232 = vpop.f32.mrf.mxu0
        %v2233 = vadd.f32 %v2184, %v2232
        %v2234 = vpop.f32.mrf.mxu0
        %v2235 = vadd.f32 %v2186, %v2234
        %2236 = vmatmul.bf16.gmra.mxu0 %v2035
        %v2237 = vpop.f32.mrf.mxu0
        %v2238 = vadd.f32 %v2189, %v2237
        %v2239 = vpop.f32.mrf.mxu0
        %v2240 = vadd.f32 %v2191, %v2239
        %2241 = vmatmul.bf16.gmra.mxu0 %v2037
        %v2242 = vpop.f32.mrf.mxu0
        %v2243 = vadd.f32 %v2194, %v2242
        %v2244 = vpop.f32.mrf.mxu0
        %v2245 = vadd.f32 %v2196, %v2244
        %2246 = vmatmul.bf16.gmra.mxu0 %v2039
        %v2247 = vpop.f32.mrf.mxu0
        %v2248 = vadd.f32 %v2199, %v2247
        %v2249 = vpop.f32.mrf.mxu0
        %v2250 = vadd.f32 %v2201, %v2249
        %2251 = vdwg.mxu0
        %2252 = vmatpush.bf16.msra.mxu0 %v1830
        %2253 = vmatpush.bf16.msra.mxu0 %v1826
        %2254 = vmatpush.bf16.msra.mxu0 %v1822
        %2255 = vmatpush.bf16.msra.mxu0 %v1818
        %2256 = vmatpush.bf16.msra.mxu0 %v1814
        %2257 = vmatpush.bf16.msra.mxu0 %v1810
        %2258 = vmatpush.bf16.msra.mxu0 %v1806
        %2259 = vmatpush.bf16.msra.mxu0 %v1802
        %2260 = vmatmul.bf16.gmra.mxu0 %v2024
        %v2261 = vpop.f32.mrf.mxu0
        %v2262 = vadd.f32 %v1899, %v2261
        %v2263 = vpop.f32.mrf.mxu0
        %v2264 = vadd.f32 %v1904, %v2263
        %2265 = vmatmul.bf16.gmra.mxu0 %v2026
        %v2266 = vpop.f32.mrf.mxu0
        %v2267 = vadd.f32 %v1909, %v2266
        %v2268 = vpop.f32.mrf.mxu0
        %v2269 = vadd.f32 %v1914, %v2268
        %2270 = vmatmul.bf16.gmra.mxu0 %v2028
        %v2271 = vpop.f32.mrf.mxu0
        %v2272 = vadd.f32 %v1919, %v2271
        %v2273 = vpop.f32.mrf.mxu0
        %v2274 = vadd.f32 %v1924, %v2273
        %2275 = vmatmul.bf16.gmra.mxu0 %v2030
        %v2276 = vpop.f32.mrf.mxu0
        %v2277 = vadd.f32 %v1929, %v2276
        %v2278 = vpop.f32.mrf.mxu0
        %v2279 = vadd.f32 %v1934, %v2278
        %2280 = vmatmul.bf16.gmra.mxu0 %v2032
        %v2281 = vpop.f32.mrf.mxu0
        %v2282 = vadd.f32 %v1939, %v2281
        %v2283 = vpop.f32.mrf.mxu0
        %v2284 = vadd.f32 %v1944, %v2283
        %2285 = vmatmul.bf16.gmra.mxu0 %v2034
        %v2286 = vpop.f32.mrf.mxu0
        %v2287 = vadd.f32 %v1949, %v2286
        %v2288 = vpop.f32.mrf.mxu0
        %v2289 = vadd.f32 %v1954, %v2288
        %2290 = vmatmul.bf16.gmra.mxu0 %v2036
        %v2291 = vpop.f32.mrf.mxu0
        %v2292 = vadd.f32 %v1959, %v2291
        %v2293 = vpop.f32.mrf.mxu0
        %v2294 = vadd.f32 %v1964, %v2293
        %2295 = vmatmul.bf16.gmra.mxu0 %v2038
        %v2296 = vpop.f32.mrf.mxu0
        %v2297 = vadd.f32 %v1969, %v2296
        %v2298 = vpop.f32.mrf.mxu0
        %v2299 = vadd.f32 %v1974, %v2298
        %2300 = vdwg.mxu0
        %2301 = vmatpush.bf16.msra.mxu0 %v1862
        %2302 = vmatpush.bf16.msra.mxu0 %v1858
        %2303 = vmatpush.bf16.msra.mxu0 %v1854
        %2304 = vmatpush.bf16.msra.mxu0 %v1850
        %2305 = vmatpush.bf16.msra.mxu0 %v1846
        %2306 = vmatpush.bf16.msra.mxu0 %v1842
        %2307 = vmatpush.bf16.msra.mxu0 %v1838
        %2308 = vmatpush.bf16.msra.mxu0 %v1834
        %2309 = vmatmul.bf16.gmra.mxu0 %v2025
        %v2310 = vpop.f32.mrf.mxu0
        %v2311 = vadd.f32 %v2262, %v2310
        %v2312 = vpop.f32.mrf.mxu0
        %v2313 = vadd.f32 %v2264, %v2312
        %2314 = vmatmul.bf16.gmra.mxu0 %v2027
        %v2315 = vpop.f32.mrf.mxu0
        %v2316 = vadd.f32 %v2267, %v2315
        %v2317 = vpop.f32.mrf.mxu0
        %v2318 = vadd.f32 %v2269, %v2317
        %2319 = vmatmul.bf16.gmra.mxu0 %v2029
        %v2320 = vpop.f32.mrf.mxu0
        %v2321 = vadd.f32 %v2272, %v2320
        %v2322 = vpop.f32.mrf.mxu0
        %v2323 = vadd.f32 %v2274, %v2322
        %2324 = vmatmul.bf16.gmra.mxu0 %v2031
        %v2325 = vpop.f32.mrf.mxu0
        %v2326 = vadd.f32 %v2277, %v2325
        %v2327 = vpop.f32.mrf.mxu0
        %v2328 = vadd.f32 %v2279, %v2327
        %2329 = vmatmul.bf16.gmra.mxu0 %v2033
        %v2330 = vpop.f32.mrf.mxu0
        %v2331 = vadd.f32 %v2282, %v2330
        %v2332 = vpop.f32.mrf.mxu0
        %v2333 = vadd.f32 %v2284, %v2332
        %2334 = vmatmul.bf16.gmra.mxu0 %v2035
        %v2335 = vpop.f32.mrf.mxu0
        %v2336 = vadd.f32 %v2287, %v2335
        %v2337 = vpop.f32.mrf.mxu0
        %v2338 = vadd.f32 %v2289, %v2337
        %2339 = vmatmul.bf16.gmra.mxu0 %v2037
        %v2340 = vpop.f32.mrf.mxu0
        %v2341 = vadd.f32 %v2292, %v2340
        %v2342 = vpop.f32.mrf.mxu0
        %v2343 = vadd.f32 %v2294, %v2342
        %2344 = vmatmul.bf16.gmra.mxu0 %v2039
        %v2345 = vpop.f32.mrf.mxu0
        %v2346 = vadd.f32 %v2297, %v2345
        %v2347 = vpop.f32.mrf.mxu0
        %v2348 = vadd.f32 %v2299, %v2347
        %2349 = vdwg.mxu0
        %2350 = vmatpush.bf16.msra.mxu0 %v1831
        %2351 = vmatpush.bf16.msra.mxu0 %v1827
        %2352 = vmatpush.bf16.msra.mxu0 %v1823
        %2353 = vmatpush.bf16.msra.mxu0 %v1819
        %2354 = vmatpush.bf16.msra.mxu0 %v1815
        %2355 = vmatpush.bf16.msra.mxu0 %v1811
        %2356 = vmatpush.bf16.msra.mxu0 %v1807
        %2357 = vmatpush.bf16.msra.mxu0 %v1803
        %2358 = vmatmul.bf16.gmra.mxu0 %v2024
        %v2359 = vpop.f32.mrf.mxu0
        %v2360 = vadd.f32 %v1899, %v2359
        %v2361 = vpop.f32.mrf.mxu0
        %v2362 = vadd.f32 %v1904, %v2361
        %2363 = vmatmul.bf16.gmra.mxu0 %v2026
        %v2364 = vpop.f32.mrf.mxu0
        %v2365 = vadd.f32 %v1909, %v2364
        %v2366 = vpop.f32.mrf.mxu0
        %v2367 = vadd.f32 %v1914, %v2366
        %2368 = vmatmul.bf16.gmra.mxu0 %v2028
        %v2369 = vpop.f32.mrf.mxu0
        %v2370 = vadd.f32 %v1919, %v2369
        %v2371 = vpop.f32.mrf.mxu0
        %v2372 = vadd.f32 %v1924, %v2371
        %2373 = vmatmul.bf16.gmra.mxu0 %v2030
        %v2374 = vpop.f32.mrf.mxu0
        %v2375 = vadd.f32 %v1929, %v2374
        %v2376 = vpop.f32.mrf.mxu0
        %v2377 = vadd.f32 %v1934, %v2376
        %2378 = vmatmul.bf16.gmra.mxu0 %v2032
        %v2379 = vpop.f32.mrf.mxu0
        %v2380 = vadd.f32 %v1939, %v2379
        %v2381 = vpop.f32.mrf.mxu0
        %v2382 = vadd.f32 %v1944, %v2381
        %2383 = vmatmul.bf16.gmra.mxu0 %v2034
        %v2384 = vpop.f32.mrf.mxu0
        %v2385 = vadd.f32 %v1949, %v2384
        %v2386 = vpop.f32.mrf.mxu0
        %v2387 = vadd.f32 %v1954, %v2386
        %2388 = vmatmul.bf16.gmra.mxu0 %v2036
        %v2389 = vpop.f32.mrf.mxu0
        %v2390 = vadd.f32 %v1959, %v2389
        %v2391 = vpop.f32.mrf.mxu0
        %v2392 = vadd.f32 %v1964, %v2391
        %2393 = vmatmul.bf16.gmra.mxu0 %v2038
        %v2394 = vpop.f32.mrf.mxu0
        %v2395 = vadd.f32 %v1969, %v2394
        %v2396 = vpop.f32.mrf.mxu0
        %v2397 = vadd.f32 %v1974, %v2396
        %2398 = vdwg.mxu0
        %2399 = vmatpush.bf16.msra.mxu0 %v1863
        %2400 = vmatpush.bf16.msra.mxu0 %v1859
        %2401 = vmatpush.bf16.msra.mxu0 %v1855
        %2402 = vmatpush.bf16.msra.mxu0 %v1851
        %2403 = vmatpush.bf16.msra.mxu0 %v1847
        %2404 = vmatpush.bf16.msra.mxu0 %v1843
        %2405 = vmatpush.bf16.msra.mxu0 %v1839
        %2406 = vmatpush.bf16.msra.mxu0 %v1835
        %2407 = vmatmul.bf16.gmra.mxu0 %v2025
        %v2408 = vpop.f32.mrf.mxu0
        %v2409 = vadd.f32 %v2360, %v2408
        %v2410 = vpop.f32.mrf.mxu0
        %v2411 = vadd.f32 %v2362, %v2410
        %2412 = vmatmul.bf16.gmra.mxu0 %v2027
        %v2413 = vpop.f32.mrf.mxu0
        %v2414 = vadd.f32 %v2365, %v2413
        %v2415 = vpop.f32.mrf.mxu0
        %v2416 = vadd.f32 %v2367, %v2415
        %2417 = vmatmul.bf16.gmra.mxu0 %v2029
        %v2418 = vpop.f32.mrf.mxu0
        %v2419 = vadd.f32 %v2370, %v2418
        %v2420 = vpop.f32.mrf.mxu0
        %v2421 = vadd.f32 %v2372, %v2420
        %2422 = vmatmul.bf16.gmra.mxu0 %v2031
        %v2423 = vpop.f32.mrf.mxu0
        %v2424 = vadd.f32 %v2375, %v2423
        %v2425 = vpop.f32.mrf.mxu0
        %v2426 = vadd.f32 %v2377, %v2425
        %2427 = vmatmul.bf16.gmra.mxu0 %v2033
        %v2428 = vpop.f32.mrf.mxu0
        %v2429 = vadd.f32 %v2380, %v2428
        %v2430 = vpop.f32.mrf.mxu0
        %v2431 = vadd.f32 %v2382, %v2430
        %2432 = vmatmul.bf16.gmra.mxu0 %v2035
        %v2433 = vpop.f32.mrf.mxu0
        %v2434 = vadd.f32 %v2385, %v2433
        %v2435 = vpop.f32.mrf.mxu0
        %v2436 = vadd.f32 %v2387, %v2435
        %2437 = vmatmul.bf16.gmra.mxu0 %v2037
        %v2438 = vpop.f32.mrf.mxu0
        %v2439 = vadd.f32 %v2390, %v2438
        %v2440 = vpop.f32.mrf.mxu0
        %v2441 = vadd.f32 %v2392, %v2440
        %2442 = vmatmul.bf16.gmra.mxu0 %v2039
        %v2443 = vpop.f32.mrf.mxu0
        %v2444 = vadd.f32 %v2395, %v2443
        %v2445 = vpop.f32.mrf.mxu0
        %v2446 = vadd.f32 %v2397, %v2445
        %2447 = vdwg.mxu0
        %v2448 = vmax.f32 %v2115, 0.0
        %v2449 = vmax.f32 %v2213, 0.0
        %v2450 = vmax.f32 %v2311, 0.0
        %v2451 = vmax.f32 %v2409, 0.0
        %v2452 = vmax.f32 %v2117, 0.0
        %v2453 = vmax.f32 %v2215, 0.0
        %v2454 = vmax.f32 %v2313, 0.0
        %v2455 = vmax.f32 %v2411, 0.0
        %v2456 = vmax.f32 %v2120, 0.0
        %v2457 = vmax.f32 %v2218, 0.0
        %v2458 = vmax.f32 %v2316, 0.0
        %v2459 = vmax.f32 %v2414, 0.0
        %v2460 = vmax.f32 %v2122, 0.0
        %v2461 = vmax.f32 %v2220, 0.0
        %v2462 = vmax.f32 %v2318, 0.0
        %v2463 = vmax.f32 %v2416, 0.0
        %v2464 = vmax.f32 %v2125, 0.0
        %v2465 = vmax.f32 %v2223, 0.0
        %v2466 = vmax.f32 %v2321, 0.0
        %v2467 = vmax.f32 %v2419, 0.0
        %v2468 = vmax.f32 %v2127, 0.0
        %v2469 = vmax.f32 %v2225, 0.0
        %v2470 = vmax.f32 %v2323, 0.0
        %v2471 = vmax.f32 %v2421, 0.0
        %v2472 = vmax.f32 %v2130, 0.0
        %v2473 = vmax.f32 %v2228, 0.0
        %v2474 = vmax.f32 %v2326, 0.0
        %v2475 = vmax.f32 %v2424, 0.0
        %v2476 = vmax.f32 %v2132, 0.0
        %v2477 = vmax.f32 %v2230, 0.0
        %v2478 = vmax.f32 %v2328, 0.0
        %v2479 = vmax.f32 %v2426, 0.0
        %v2480 = vmax.f32 %v2135, 0.0
        %v2481 = vmax.f32 %v2233, 0.0
        %v2482 = vmax.f32 %v2331, 0.0
        %v2483 = vmax.f32 %v2429, 0.0
        %v2484 = vmax.f32 %v2137, 0.0
        %v2485 = vmax.f32 %v2235, 0.0
        %v2486 = vmax.f32 %v2333, 0.0
        %v2487 = vmax.f32 %v2431, 0.0
        %v2488 = vmax.f32 %v2140, 0.0
        %v2489 = vmax.f32 %v2238, 0.0
        %v2490 = vmax.f32 %v2336, 0.0
        %v2491 = vmax.f32 %v2434, 0.0
        %v2492 = vmax.f32 %v2142, 0.0
        %v2493 = vmax.f32 %v2240, 0.0
        %v2494 = vmax.f32 %v2338, 0.0
        %v2495 = vmax.f32 %v2436, 0.0
        %v2496 = vmax.f32 %v2145, 0.0
        %v2497 = vmax.f32 %v2243, 0.0
        %v2498 = vmax.f32 %v2341, 0.0
        %v2499 = vmax.f32 %v2439, 0.0
        %v2500 = vmax.f32 %v2147, 0.0
        %v2501 = vmax.f32 %v2245, 0.0
        %v2502 = vmax.f32 %v2343, 0.0
        %v2503 = vmax.f32 %v2441, 0.0
        %v2504 = vmax.f32 %v2150, 0.0
        %v2505 = vmax.f32 %v2248, 0.0
        %v2506 = vmax.f32 %v2346, 0.0
        %v2507 = vmax.f32 %v2444, 0.0
        %v2508 = vmax.f32 %v2152, 0.0
        %v2509 = vmax.f32 %v2250, 0.0
        %v2510 = vmax.f32 %v2348, 0.0
        %v2511 = vmax.f32 %v2446, 0.0
        %v2512 = vpack.c.bf16 %v2452, %v2448
        %v2513 = vpack.c.bf16 %v2453, %v2449
        %v2514 = vpack.c.bf16 %v2454, %v2450
        %v2515 = vpack.c.bf16 %v2455, %v2451
        %v2516 = vpack.c.bf16 %v2460, %v2456
        %v2517 = vpack.c.bf16 %v2461, %v2457
        %v2518 = vpack.c.bf16 %v2462, %v2458
        %v2519 = vpack.c.bf16 %v2463, %v2459
        %v2520 = vpack.c.bf16 %v2468, %v2464
        %v2521 = vpack.c.bf16 %v2469, %v2465
        %v2522 = vpack.c.bf16 %v2470, %v2466
        %v2523 = vpack.c.bf16 %v2471, %v2467
        %v2524 = vpack.c.bf16 %v2476, %v2472
        %v2525 = vpack.c.bf16 %v2477, %v2473
        %v2526 = vpack.c.bf16 %v2478, %v2474
        %v2527 = vpack.c.bf16 %v2479, %v2475
        %v2528 = vpack.c.bf16 %v2484, %v2480
        %v2529 = vpack.c.bf16 %v2485, %v2481
        %v2530 = vpack.c.bf16 %v2486, %v2482
        %v2531 = vpack.c.bf16 %v2487, %v2483
        %v2532 = vpack.c.bf16 %v2492, %v2488
        %v2533 = vpack.c.bf16 %v2493, %v2489
        %v2534 = vpack.c.bf16 %v2494, %v2490
        %v2535 = vpack.c.bf16 %v2495, %v2491
        %v2536 = vpack.c.bf16 %v2500, %v2496
        %v2537 = vpack.c.bf16 %v2501, %v2497
        %v2538 = vpack.c.bf16 %v2502, %v2498
        %v2539 = vpack.c.bf16 %v2503, %v2499
        %v2540 = vpack.c.bf16 %v2508, %v2504
        %v2541 = vpack.c.bf16 %v2509, %v2505
        %v2542 = vpack.c.bf16 %v2510, %v2506
        %v2543 = vpack.c.bf16 %v2511, %v2507
        %v2544 = vld [vmem:[%s5] sm:$0xf]
        %v2545 = vld [vmem:[%s5 + $0x4] sm:$0xf]
        %v2546 = vld [vmem:[%s5 + $0x8] sm:$0xf]
        %v2547 = vld [vmem:[%s5 + $0xc] sm:$0xf]
        %v2548 = vld [vmem:[%s5 + $0x10] sm:$0xf]
        %v2549 = vld [vmem:[%s5 + $0x14] sm:$0xf]
        %v2550 = vld [vmem:[%s5 + $0x18] sm:$0xf]
        %v2551 = vld [vmem:[%s5 + $0x1c] sm:$0xf]
        %v2552 = vld [vmem:[%s6] sm:$0xff]
        %v2553 = vld [vmem:[%s6 + $0x8] sm:$0xff]
        %v2554 = vld [vmem:[%s6 + $0x10] sm:$0xff]
        %v2555 = vld [vmem:[%s6 + $0x18] sm:$0xff]
        %v2556 = vld [vmem:[%s6 + $0x20] sm:$0xff]
        %v2557 = vld [vmem:[%s6 + $0x28] sm:$0xff]
        %v2558 = vld [vmem:[%s6 + $0x30] sm:$0xff]
        %v2559 = vld [vmem:[%s6 + $0x38] sm:$0xff]
        %2561 = vset.pattern.permute.xlu0 0
        %2562 = vperm.xlu0 %2561, %v2552
        %v2563 = vpop.permute.xlu0 %2562
        %2566 = vset.pattern.permute.xlu0 0
        %2567 = vperm.xlu0 %2566, %v2553
        %v2568 = vpop.permute.xlu0 %2567
        %2571 = vset.pattern.permute.xlu0 0
        %2572 = vperm.xlu0 %2571, %v2554
        %v2573 = vpop.permute.xlu0 %2572
        %2576 = vset.pattern.permute.xlu0 0
        %2577 = vperm.xlu0 %2576, %v2555
        %v2578 = vpop.permute.xlu0 %2577
        %2581 = vset.pattern.permute.xlu0 0
        %2582 = vperm.xlu0 %2581, %v2556
        %v2583 = vpop.permute.xlu0 %2582
        %2586 = vset.pattern.permute.xlu0 0
        %2587 = vperm.xlu0 %2586, %v2557
        %v2588 = vpop.permute.xlu0 %2587
        %2591 = vset.pattern.permute.xlu0 0
        %2592 = vperm.xlu0 %2591, %v2558
        %v2593 = vpop.permute.xlu0 %2592
        %2596 = vset.pattern.permute.xlu0 0
        %2597 = vperm.xlu0 %2596, %v2559
        %v2598 = vpop.permute.xlu0 %2597
        %v2608 = vunpack.c.l.b16 %v2544
        %v2609 = vunpack.c.l.b16 %v2545
        %v2610 = vunpack.c.l.b16 %v2546
        %v2611 = vunpack.c.l.b16 %v2547
        %v2612 = vunpack.c.l.b16 %v2548
        %v2613 = vunpack.c.l.b16 %v2549
        %v2614 = vunpack.c.l.b16 %v2550
        %v2615 = vunpack.c.l.b16 %v2551
        %v2616 = vpack.c.b16 %v2609, %v2608
        %v2617 = vpack.c.b16 %v2611, %v2610
        %v2618 = vpack.c.b16 %v2613, %v2612
        %v2619 = vpack.c.b16 %v2615, %v2614
        %2624 = vmatpush.bf16.msra.mxu0 %v2540
        %2625 = vmatpush.bf16.msra.mxu0 %v2536
        %2626 = vmatpush.bf16.msra.mxu0 %v2532
        %2627 = vmatpush.bf16.msra.mxu0 %v2528
        %2628 = vmatpush.bf16.msra.mxu0 %v2524
        %2629 = vmatpush.bf16.msra.mxu0 %v2520
        %2630 = vmatpush.bf16.msra.mxu0 %v2516
        %2631 = vmatpush.bf16.msra.mxu0 %v2512
        %2632 = vmatmul.bf16.gmra.mxu0 %v2616
        %v2633 = vpop.f32.mrf.mxu0
        %v2634 = vadd.f32 %v2563, %v2633
        %v2635 = vpop.f32.mrf.mxu0
        %v2636 = vadd.f32 %v2568, %v2635
        %2637 = vmatmul.bf16.gmra.mxu0 %v2617
        %v2638 = vpop.f32.mrf.mxu0
        %v2639 = vadd.f32 %v2573, %v2638
        %v2640 = vpop.f32.mrf.mxu0
        %v2641 = vadd.f32 %v2578, %v2640
        %2642 = vmatmul.bf16.gmra.mxu0 %v2618
        %v2643 = vpop.f32.mrf.mxu0
        %v2644 = vadd.f32 %v2583, %v2643
        %v2645 = vpop.f32.mrf.mxu0
        %v2646 = vadd.f32 %v2588, %v2645
        %2647 = vmatmul.bf16.gmra.mxu0 %v2619
        %v2648 = vpop.f32.mrf.mxu0
        %v2649 = vadd.f32 %v2593, %v2648
        %v2650 = vpop.f32.mrf.mxu0
        %v2651 = vadd.f32 %v2598, %v2650
        %2652 = vdwg.mxu0
        %2653 = vmatpush.bf16.msra.mxu0 %v2541
        %2654 = vmatpush.bf16.msra.mxu0 %v2537
        %2655 = vmatpush.bf16.msra.mxu0 %v2533
        %2656 = vmatpush.bf16.msra.mxu0 %v2529
        %2657 = vmatpush.bf16.msra.mxu0 %v2525
        %2658 = vmatpush.bf16.msra.mxu0 %v2521
        %2659 = vmatpush.bf16.msra.mxu0 %v2517
        %2660 = vmatpush.bf16.msra.mxu0 %v2513
        %2661 = vmatmul.bf16.gmra.mxu0 %v2616
        %v2662 = vpop.f32.mrf.mxu0
        %v2663 = vadd.f32 %v2563, %v2662
        %v2664 = vpop.f32.mrf.mxu0
        %v2665 = vadd.f32 %v2568, %v2664
        %2666 = vmatmul.bf16.gmra.mxu0 %v2617
        %v2667 = vpop.f32.mrf.mxu0
        %v2668 = vadd.f32 %v2573, %v2667
        %v2669 = vpop.f32.mrf.mxu0
        %v2670 = vadd.f32 %v2578, %v2669
        %2671 = vmatmul.bf16.gmra.mxu0 %v2618
        %v2672 = vpop.f32.mrf.mxu0
        %v2673 = vadd.f32 %v2583, %v2672
        %v2674 = vpop.f32.mrf.mxu0
        %v2675 = vadd.f32 %v2588, %v2674
        %2676 = vmatmul.bf16.gmra.mxu0 %v2619
        %v2677 = vpop.f32.mrf.mxu0
        %v2678 = vadd.f32 %v2593, %v2677
        %v2679 = vpop.f32.mrf.mxu0
        %v2680 = vadd.f32 %v2598, %v2679
        %2681 = vdwg.mxu0
        %2682 = vmatpush.bf16.msra.mxu0 %v2542
        %2683 = vmatpush.bf16.msra.mxu0 %v2538
        %2684 = vmatpush.bf16.msra.mxu0 %v2534
        %2685 = vmatpush.bf16.msra.mxu0 %v2530
        %2686 = vmatpush.bf16.msra.mxu0 %v2526
        %2687 = vmatpush.bf16.msra.mxu0 %v2522
        %2688 = vmatpush.bf16.msra.mxu0 %v2518
        %2689 = vmatpush.bf16.msra.mxu0 %v2514
        %2690 = vmatmul.bf16.gmra.mxu0 %v2616
        %v2691 = vpop.f32.mrf.mxu0
        %v2692 = vadd.f32 %v2563, %v2691
        %v2693 = vpop.f32.mrf.mxu0
        %v2694 = vadd.f32 %v2568, %v2693
        %2695 = vmatmul.bf16.gmra.mxu0 %v2617
        %v2696 = vpop.f32.mrf.mxu0
        %v2697 = vadd.f32 %v2573, %v2696
        %v2698 = vpop.f32.mrf.mxu0
        %v2699 = vadd.f32 %v2578, %v2698
        %2700 = vmatmul.bf16.gmra.mxu0 %v2618
        %v2701 = vpop.f32.mrf.mxu0
        %v2702 = vadd.f32 %v2583, %v2701
        %v2703 = vpop.f32.mrf.mxu0
        %v2704 = vadd.f32 %v2588, %v2703
        %2705 = vmatmul.bf16.gmra.mxu0 %v2619
        %v2706 = vpop.f32.mrf.mxu0
        %v2707 = vadd.f32 %v2593, %v2706
        %v2708 = vpop.f32.mrf.mxu0
        %v2709 = vadd.f32 %v2598, %v2708
        %2710 = vdwg.mxu0
        %2711 = vmatpush.bf16.msra.mxu0 %v2543
        %2712 = vmatpush.bf16.msra.mxu0 %v2539
        %2713 = vmatpush.bf16.msra.mxu0 %v2535
        %2714 = vmatpush.bf16.msra.mxu0 %v2531
        %2715 = vmatpush.bf16.msra.mxu0 %v2527
        %2716 = vmatpush.bf16.msra.mxu0 %v2523
        %2717 = vmatpush.bf16.msra.mxu0 %v2519
        %2718 = vmatpush.bf16.msra.mxu0 %v2515
        %2719 = vmatmul.bf16.gmra.mxu0 %v2616
        %v2720 = vpop.f32.mrf.mxu0
        %v2721 = vadd.f32 %v2563, %v2720
        %v2722 = vpop.f32.mrf.mxu0
        %v2723 = vadd.f32 %v2568, %v2722
        %2724 = vmatmul.bf16.gmra.mxu0 %v2617
        %v2725 = vpop.f32.mrf.mxu0
        %v2726 = vadd.f32 %v2573, %v2725
        %v2727 = vpop.f32.mrf.mxu0
        %v2728 = vadd.f32 %v2578, %v2727
        %2729 = vmatmul.bf16.gmra.mxu0 %v2618
        %v2730 = vpop.f32.mrf.mxu0
        %v2731 = vadd.f32 %v2583, %v2730
        %v2732 = vpop.f32.mrf.mxu0
        %v2733 = vadd.f32 %v2588, %v2732
        %2734 = vmatmul.bf16.gmra.mxu0 %v2619
        %v2735 = vpop.f32.mrf.mxu0
        %v2736 = vadd.f32 %v2593, %v2735
        %v2737 = vpop.f32.mrf.mxu0
        %v2738 = vadd.f32 %v2598, %v2737
        %2739 = vdwg.mxu0
        %v2740 = vmax.f32 %v2634, 0.0
        %v2741 = vmax.f32 %v2663, 0.0
        %v2742 = vmax.f32 %v2692, 0.0
        %v2743 = vmax.f32 %v2721, 0.0
        %v2744 = vmax.f32 %v2636, 0.0
        %v2745 = vmax.f32 %v2665, 0.0
        %v2746 = vmax.f32 %v2694, 0.0
        %v2747 = vmax.f32 %v2723, 0.0
        %v2748 = vmax.f32 %v2639, 0.0
        %v2749 = vmax.f32 %v2668, 0.0
        %v2750 = vmax.f32 %v2697, 0.0
        %v2751 = vmax.f32 %v2726, 0.0
        %v2752 = vmax.f32 %v2641, 0.0
        %v2753 = vmax.f32 %v2670, 0.0
        %v2754 = vmax.f32 %v2699, 0.0
        %v2755 = vmax.f32 %v2728, 0.0
        %v2756 = vmax.f32 %v2644, 0.0
        %v2757 = vmax.f32 %v2673, 0.0
        %v2758 = vmax.f32 %v2702, 0.0
        %v2759 = vmax.f32 %v2731, 0.0
        %v2760 = vmax.f32 %v2646, 0.0
        %v2761 = vmax.f32 %v2675, 0.0
        %v2762 = vmax.f32 %v2704, 0.0
        %v2763 = vmax.f32 %v2733, 0.0
        %v2764 = vmax.f32 %v2649, 0.0
        %v2765 = vmax.f32 %v2678, 0.0
        %v2766 = vmax.f32 %v2707, 0.0
        %v2767 = vmax.f32 %v2736, 0.0
        %v2768 = vmax.f32 %v2651, 0.0
        %v2769 = vmax.f32 %v2680, 0.0
        %v2770 = vmax.f32 %v2709, 0.0
        %v2771 = vmax.f32 %v2738, 0.0
        %v2772 = vpack.c.bf16 %v2744, %v2740
        %v2773 = vpack.c.bf16 %v2745, %v2741
        %v2774 = vpack.c.bf16 %v2746, %v2742
        %v2775 = vpack.c.bf16 %v2747, %v2743
        %v2776 = vpack.c.bf16 %v2752, %v2748
        %v2777 = vpack.c.bf16 %v2753, %v2749
        %v2778 = vpack.c.bf16 %v2754, %v2750
        %v2779 = vpack.c.bf16 %v2755, %v2751
        %v2780 = vpack.c.bf16 %v2760, %v2756
        %v2781 = vpack.c.bf16 %v2761, %v2757
        %v2782 = vpack.c.bf16 %v2762, %v2758
        %v2783 = vpack.c.bf16 %v2763, %v2759
        %v2784 = vpack.c.bf16 %v2768, %v2764
        %v2785 = vpack.c.bf16 %v2769, %v2765
        %v2786 = vpack.c.bf16 %v2770, %v2766
        %v2787 = vpack.c.bf16 %v2771, %v2767
        %v2788 = vld [vmem:[%s7] sm:$0xf]
        %v2789 = vld [vmem:[%s8] sm:$0xff]
        %2791 = vset.pattern.permute.xlu0 0
        %2792 = vperm.xlu0 %2791, %v2789
        %v2793 = vpop.permute.xlu0 %2792
        %vm2795 = vcmask 523264
        %v2797 = vsel %vm2795, %v2788, 0
        %2799 = vmatpush.bf16.msra.mxu0 0
        %2800 = vmatpush.bf16.msra.mxu0 0
        %2801 = vmatpush.bf16.msra.mxu0 0
        %2802 = vmatpush.bf16.msra.mxu0 0
        %2803 = vmatpush.bf16.msra.mxu0 %v2784
        %2804 = vmatpush.bf16.msra.mxu0 %v2780
        %2805 = vmatpush.bf16.msra.mxu0 %v2776
        %2806 = vmatpush.bf16.msra.mxu0 %v2772
        %2807 = vmatmul.bf16.gmra.mxu0 %v2797
        %v2808 = vpop.f32.mrf.mxu0
        %v2809 = vadd.f32 %v2793, %v2808
        %v2810 = vpop.f32.mrf.mxu0
        %2811 = vdwg.mxu0
        %2812 = vmatpush.bf16.msra.mxu0 0
        %2813 = vmatpush.bf16.msra.mxu0 0
        %2814 = vmatpush.bf16.msra.mxu0 0
        %2815 = vmatpush.bf16.msra.mxu0 0
        %2816 = vmatpush.bf16.msra.mxu0 %v2785
        %2817 = vmatpush.bf16.msra.mxu0 %v2781
        %2818 = vmatpush.bf16.msra.mxu0 %v2777
        %2819 = vmatpush.bf16.msra.mxu0 %v2773
        %2820 = vmatmul.bf16.gmra.mxu0 %v2797
        %v2821 = vpop.f32.mrf.mxu0
        %v2822 = vadd.f32 %v2793, %v2821
        %v2823 = vpop.f32.mrf.mxu0
        %2824 = vdwg.mxu0
        %2825 = vmatpush.bf16.msra.mxu0 0
        %2826 = vmatpush.bf16.msra.mxu0 0
        %2827 = vmatpush.bf16.msra.mxu0 0
        %2828 = vmatpush.bf16.msra.mxu0 0
        %2829 = vmatpush.bf16.msra.mxu0 %v2786
        %2830 = vmatpush.bf16.msra.mxu0 %v2782
        %2831 = vmatpush.bf16.msra.mxu0 %v2778
        %2832 = vmatpush.bf16.msra.mxu0 %v2774
        %2833 = vmatmul.bf16.gmra.mxu0 %v2797
        %v2834 = vpop.f32.mrf.mxu0
        %v2835 = vadd.f32 %v2793, %v2834
        %v2836 = vpop.f32.mrf.mxu0
        %2837 = vdwg.mxu0
        %2838 = vmatpush.bf16.msra.mxu0 0
        %2839 = vmatpush.bf16.msra.mxu0 0
        %2840 = vmatpush.bf16.msra.mxu0 0
        %2841 = vmatpush.bf16.msra.mxu0 0
        %2842 = vmatpush.bf16.msra.mxu0 %v2787
        %2843 = vmatpush.bf16.msra.mxu0 %v2783
        %2844 = vmatpush.bf16.msra.mxu0 %v2779
        %2845 = vmatpush.bf16.msra.mxu0 %v2775
        %2846 = vmatmul.bf16.gmra.mxu0 %v2797
        %v2847 = vpop.f32.mrf.mxu0
        %v2848 = vadd.f32 %v2793, %v2847
        %v2849 = vpop.f32.mrf.mxu0
        %2850 = vdwg.mxu0
        %v2851 = vtanh.pop %v2809
        %v2852 = vtanh.pop %v2822
        %v2853 = vtanh.pop %v2835
        %v2854 = vtanh.pop %v2848
        %2855 = vst [vmem:[%s381] sm:$0xff] %v2851
        %2856 = vst [vmem:[%s381 + $0x8] sm:$0xff] %v2852
        %2857 = vst [vmem:[%s381 + $0x10] sm:$0xff] %v2853
        %2858 = vst [vmem:[%s381 + $0x18] sm:$0xff] %v2854
        %s2859 = smul.u32 4, %s28
        %p2860 = scmp.lt.s32.totalorder %s27, 1
        %s2861 = scalar_select %p2860, %s27, 1
        %p2862 = scmp.lt.s32.totalorder %s2859, 3
        %s2863 = scalar_select %p2862, %s2859, 3
        %s2864 = smul.addr %s2861, 4
        %s2865 = sadd.s32 %s2863, %s2864
        %s2866 = smul.addr %s2865, 8
        %s2867 = scalar_lea.vmem %s9, %s2866
        // Predicated region
        $region61: #{_pointgencon_call.1} parent=55 // pred_check
          %p2868 = pneg %p251
        $region62: #{_pointgencon_call.1} parent=55 // pred_check_branch
          %2870 = sbr.rel (%p2868) target = $region64
        $region63: #{_pointgencon_call.1} parent=55 // pred_region
          %s2871 = smul.u32 4, %s28
        $region64: #{_pointgencon_call.1} parent=55 // pred_fallthru
          _
      $region56: #{_pointgencon_call.1} parent=5 // pred_fallthru
        _
      %p2872 = scmp.le.s32.totalorder 2, %s18
      // Predicated region
      $region65: #{_pointgencon_call.1} parent=5 // pred_check
        %p2873 = pneg %p2872
      $region66: #{_pointgencon_call.1} parent=5 // pred_check_branch
        %2875 = sbr.rel (%p2873) target = $region68
      $region67: #{_pointgencon_call.1} parent=5 // pred_region
        %s2876 = ssub.s32 %s18, 2
        // Predicated region
        $region69: #{_pointgencon_call.1} parent=67 // pred_check
          %p2877 = pneg %p257
        $region70: #{_pointgencon_call.1} parent=67 // pred_check_branch
          %2879 = sbr.rel (%p2877) target = $region72
        $region71: #{_pointgencon_call.1} parent=67 // pred_region
          %s2880 = smul.u32 4, %s30
          %p2881 = scmp.lt.s32.totalorder %s29, 1
          %s2882 = scalar_select %p2881, %s29, 1
          %p2883 = scmp.lt.s32.totalorder %s2880, 3
          %s2884 = scalar_select %p2883, %s2880, 3
          %s2885 = smul.addr %s2882, 4
          %s2886 = sadd.s32 %s2884, %s2885
          %s2887 = smul.addr %s2886, 8
          %s2888 = scalar_lea.vmem %s9, %s2887
        $region72: #{_pointgencon_call.1} parent=67 // pred_fallthru
          _
      $region68: #{_pointgencon_call.1} parent=5 // pred_fallthru
        _
    $region6: #{_pointgencon_call.1} parent=1 // loop_footer
      %s22 = sadd.s32 1, %s18
    $region7: #{_pointgencon_call.1} parent=1 // loop_footer_branch
      %17 = sbr.rel target = $region3
    $region8: #{_pointgencon_call.1} parent=1 // loop_exit
      _
    %2889 = vsyncpa [#allocation3], 1
    %s2890 = scalar_lea.sflag [#allocation3], 1
    %2891 = vsyncpa %s2890, 1

</llo_original>
